<compile_context>
chip_gen: v6e
topology: v6e:2x2x1
jax: 0.10.0
libtpu: 0.0.40
codegen_flags: <defaults>
</compile_context>

<pallas_src>
import jax
import jax.numpy as jnp
import numpy as np
from jax.experimental import pallas as pl
from jax.experimental.pallas import tpu as pltpu


def _rbf_kernel(xa_ref, cta_ref, w_ref, o_ref):
    # xa_ref:  (tn, D+2)  -- augmented x tile: [x, ||x||^2, 1]
    # cta_ref: (D+2, tm)  -- augmented centers tile: [-2*c^T ; 1 ; ||c||^2]
    # w_ref:   (1, tm)    -- weights / 3 tile
    # o_ref:   (tn, tm)   -- output tile
    # One MXU dot yields the full squared distance:
    #   dot = -2 x.c + ||x||^2 + ||c||^2
    d2 = jnp.maximum(
        jnp.dot(xa_ref[...], cta_ref[...], preferred_element_type=jnp.float32),
        0.0,
    )
    d = jnp.sqrt(d2)                       # EUP

    # (1 - d)^6 * (35 d^2 + 18 d + 3) * (w / 3), power expanded for 3 VPU mults
    t = 1.0 - d
    t2 = t * t
    t6 = t2 * t2 * t2
    poly = 35.0 * d2 + 18.0 * d + 3.0
    o_ref[...] = (t6 * poly * w_ref[...]).astype(o_ref.dtype)


def rbf_forward(x, centers, weights, *, tile_n=512, tile_m=512,
                out_dtype=jnp.float32):
    """Pallas RBF forward. x:(N,D), centers:(M,D), weights:(M,) -> (N,M)."""
    N, D = x.shape
    M, Dc = centers.shape
    assert D == Dc, "feature dims of x and centers must match"

    tile_n = min(tile_n, N)
    tile_m = min(tile_m, M)
    # Give the N axis at least 2 grid steps when possible (v7x has 2 TCs).
    if N // tile_n < 2:
        half = tile_n // 2
        if half >= 8 and half % 8 == 0 and N % half == 0:
            tile_n = half
    assert N % tile_n == 0 and M % tile_m == 0, "shapes must tile evenly"
    assert tile_m % 128 == 0 or tile_m == M, "tile_m must be 128-aligned or M"

    f32 = jnp.float32
    xf = x.astype(f32)
    cf = centers.astype(f32)

    # Hoisted prep (cheap one-time XLA ops, not per grid step):
    #   x_aug  = [x, ||x||^2, 1]               (N, D+2)
    #   ct_aug = [-2*centers^T ; 1 ; ||c||^2]  (D+2, M)
    x2 = jnp.sum(xf * xf, axis=1, keepdims=True)                    # (N, 1)
    x_aug = jnp.concatenate([xf, x2, jnp.ones_like(x2)], axis=1)    # (N, D+2)
    c2 = jnp.sum(cf * cf, axis=1).reshape(1, M)                     # (1, M)
    ct_aug = jnp.concatenate(
        [-2.0 * jnp.transpose(cf), jnp.ones((1, M), f32), c2], axis=0
    )                                                               # (D+2, M)
    w_scaled = (weights.astype(f32) / 3.0).reshape(1, M)            # fold /3

    Daug = D + 2
    grid = (N // tile_n, M // tile_m)

    cost = pl.CostEstimate(
        flops=2 * N * M * Daug + 12 * N * M,
        transcendentals=N * M,  # sqrt
        bytes_accessed=(N * Daug * 4 + Daug * M * 4 + M * 4
                        + N * M * jnp.dtype(out_dtype).itemsize),
    )

    return pl.pallas_call(
        _rbf_kernel,
        out_shape=jax.ShapeDtypeStruct((N, M), out_dtype),
        grid_spec=pltpu.PrefetchScalarGridSpec(
            num_scalar_prefetch=0,
            grid=grid,
            in_specs=[
                pl.BlockSpec((tile_n, Daug), lambda i, j: (i, 0)),   # x_aug
                pl.BlockSpec((Daug, tile_m), lambda i, j: (0, j)),   # ct_aug
                pl.BlockSpec((1, tile_m), lambda i, j: (0, j)),      # weights/3
            ],
            out_specs=pl.BlockSpec((tile_n, tile_m), lambda i, j: (i, j)),
        ),
        compiler_params=pltpu.CompilerParams(
            dimension_semantics=("parallel", "parallel"),
        ),
        cost_estimate=cost,
    )(x_aug, ct_aug, w_scaled)


def rbf_reference(x, centers, weights):
    """Pure-JAX reference mirroring the PyTorch forward exactly."""
    diff = x[:, None, :] - centers[None, :, :]          # (N, M, D)
    d = jnp.sqrt(jnp.sum(diff * diff, axis=2))          # (N, M)
    rbf = (1.0 - d) ** 6 * (35.0 * d * d + 18.0 * d + 3.0) / 3.0
    return rbf * weights[None, :]


if __name__ == "__main__":
    key = jax.random.PRNGKey(0)
    k_x, k_c, k_w = jax.random.split(key, 3)

    N, D = 512, 32         # batch, in_features
    M = 256                # out_features

    x = jax.random.normal(k_x, (N, D), dtype=jnp.float32)
    centers = jax.random.normal(k_c, (M, D), dtype=jnp.float32)
    # reset_parameters(): uniform_(-1, 1) on weights, done deterministically here.
    weights = jax.random.uniform(k_w, (M,), minval=-1.0, maxval=1.0,
                                 dtype=jnp.float32)

    out = rbf_forward(x, centers, weights)
    out = jax.block_until_ready(out)

    ref = rbf_reference(x, centers, weights)
    # NOTE: the ||x||^2 + ||c||^2 - 2 x.c formulation can lose precision for
    # points extremely close to a center (clamped at 0); tolerance reflects that.
    np.testing.assert_allclose(np.asarray(out), np.asarray(ref),
                               rtol=2e-3, atol=1e-2)

    print("KERNEL_OK")
</pallas_src>

<mosaic_0001>
module attributes {stable_mosaic.version = 11 : i64} {
  func.func @_rbf_kernel(%arg0: i32, %arg1: i32, %arg2: memref<256x34xf32, #tpu.memory_space<vmem>>, %arg3: memref<34x256xf32, #tpu.memory_space<vmem>>, %arg4: memref<1x256xf32, #tpu.memory_space<vmem>>, %arg5: memref<256x256xf32, #tpu.memory_space<vmem>>) attributes {dimension_semantics = [#tpu.dimension_semantics<parallel>, #tpu.dimension_semantics<parallel>], iteration_bounds = array<i64: 2, 1>, scalar_prefetch = 0 : i64, scratch_operands = 0 : i64, tpu.core_type = #tpu.core_type<tc>, window_params = [{transform_indices = @transform_0, window_bounds = array<i64: 256, 34>}, {transform_indices = @transform_1, window_bounds = array<i64: 34, 256>}, {transform_indices = @transform_2, window_bounds = array<i64: 1, 256>}, {transform_indices = @transform_3, window_bounds = array<i64: 256, 256>}]} {
    %c0 = arith.constant 0 : index
    %c0_0 = arith.constant 0 : index
    %0 = vector.load %arg2[%c0, %c0_0] : memref<256x34xf32, #tpu.memory_space<vmem>>, vector<256x34xf32>
    %c0_1 = arith.constant 0 : index
    %c0_2 = arith.constant 0 : index
    %1 = vector.load %arg3[%c0_1, %c0_2] : memref<34x256xf32, #tpu.memory_space<vmem>>, vector<34x256xf32>
    %cst = arith.constant dense<0.000000e+00> : vector<256x256xf32>
    %2 = tpu.matmul %0, %1, %cst {dimension_numbers = #tpu.dot_dimension_numbers<[1], [0], [0], [1], [0, 0, 1, 1], [], []>} : vector<256x34xf32>, vector<34x256xf32>, vector<256x256xf32> -> vector<256x256xf32>
    %cst_3 = arith.constant 0.000000e+00 : f32
    %3 = vector.broadcast %cst_3 : f32 to vector<256x256xf32>
    %4 = arith.maximumf %2, %3 : vector<256x256xf32>
    %5 = math.sqrt %4 : vector<256x256xf32>
    %cst_4 = arith.constant 1.000000e+00 : f32
    %6 = vector.broadcast %cst_4 : f32 to vector<256x256xf32>
    %7 = arith.subf %6, %5 : vector<256x256xf32>
    %8 = arith.mulf %7, %7 : vector<256x256xf32>
    %9 = arith.mulf %8, %8 : vector<256x256xf32>
    %10 = arith.mulf %9, %8 : vector<256x256xf32>
    %cst_5 = arith.constant 3.500000e+01 : f32
    %11 = vector.broadcast %cst_5 : f32 to vector<256x256xf32>
    %12 = arith.mulf %11, %4 : vector<256x256xf32>
    %cst_6 = arith.constant 1.800000e+01 : f32
    %13 = vector.broadcast %cst_6 : f32 to vector<256x256xf32>
    %14 = arith.mulf %13, %5 : vector<256x256xf32>
    %15 = arith.addf %12, %14 : vector<256x256xf32>
    %cst_7 = arith.constant 3.000000e+00 : f32
    %16 = vector.broadcast %cst_7 : f32 to vector<256x256xf32>
    %17 = arith.addf %15, %16 : vector<256x256xf32>
    %18 = arith.mulf %10, %17 : vector<256x256xf32>
    %c0_8 = arith.constant 0 : index
    %c0_9 = arith.constant 0 : index
    %19 = vector.load %arg4[%c0_8, %c0_9] : memref<1x256xf32, #tpu.memory_space<vmem>>, vector<1x256xf32>
    %20 = vector.broadcast %19 : vector<1x256xf32> to vector<256x256xf32>
    %21 = arith.mulf %18, %20 : vector<256x256xf32>
    %c0_10 = arith.constant 0 : index
    %c0_11 = arith.constant 0 : index
    %22 = vector.load %arg5[%c0_10, %c0_11] : memref<256x256xf32, #tpu.memory_space<vmem>>, vector<256x256xf32>
    tpu.vector_store %arg5[%c0_10, %c0_11], %21 {strides = array<i32>} : memref<256x256xf32, #tpu.memory_space<vmem>>, vector<256x256xf32>,
    return
  }
  func.func @transform_0(%arg0: i32, %arg1: i32) -> (i32, i32) {
    %c0_i32 = arith.constant 0 : i32
    %c0_i32_0 = arith.constant 0 : i32
    return %arg0, %c0_i32 : i32, i32
  }
  func.func @transform_1(%arg0: i32, %arg1: i32) -> (i32, i32) {
    %c0_i32 = arith.constant 0 : i32
    %c0_i32_0 = arith.constant 0 : i32
    return %c0_i32, %arg1 : i32, i32
  }
  func.func @transform_2(%arg0: i32, %arg1: i32) -> (i32, i32) {
    %c0_i32 = arith.constant 0 : i32
    %c0_i32_0 = arith.constant 0 : i32
    return %c0_i32, %arg1 : i32, i32
  }
  func.func @transform_3(%arg0: i32, %arg1: i32) -> (i32, i32) {
    %c0_i32 = arith.constant 0 : i32
    return %arg0, %arg1 : i32, i32
  }
}

</mosaic_0001>

<llo_original>
// kernel: tpu_custom_call.1
$region0: #{tpu_custom_call.1}
  #allocation0 [shape = 'u32[]', space=smem, size = 0x4, offset = 0x4, fixed_abs, tag = 'smem constant byte address 0x4 - core index']
  #allocation1 [shape = 'u32[144,128]{1,0:T(1,128)}', space=vmem, size = 0x12000, scoped, tag = 'internal scratch']
  %s0 = inlined_call_operand.vmem [shape: f32[512,34], index: 0, kind: input, shape index: {}]
  %s1 = inlined_call_operand.vmem [shape: f32[34,256], index: 1, kind: input, shape index: {}]
  %s2 = inlined_call_operand.vmem [shape: f32[1,256], index: 2, kind: input, shape index: {}]
  %s3 = inlined_call_operand.hbm [shape: f32[512,256], index: 3, kind: output, shape index: {}]
  %s4 = sld [smem:[#allocation0]]
  $region45: #{tpu_custom_call.1} parent=0
    _
  %s6 = ssub.s32 1, %s4
  %s7 = scalar_select 0, %s6, %s4
  $region1: #{tpu_custom_call.1} parent=0
    #allocation2 [shape = 'u8[524288]{0}', space=vmem, size = 0x80000, scoped, tag = 'output window, operand 0']
    #allocation3 [shape = 's32[2]{0}', space=sflag, size = 0x8, scoped, tag = 'scoped memory for tpu_custom_call.1']
    %8 = vsyncpa [#allocation3], 0
    %s9 = scalar_lea.sflag [#allocation3], 1
    %10 = vsyncpa %s9, 0
    loop: start=0, step=1, limit=4
    $region2: #{tpu_custom_call.1} parent=1 // loop_pre_header
      _
    $region3: #{tpu_custom_call.1} parent=1 // loop_header
      %s12 = sphi 0, %s16
      %p13 = scmp.ge.s32.totalorder %s12, 4
      %s19 = sphi 0, %s31
      %s20 = sphi 0, %s27
      %s21 = sphi 0, %s19
      %s22 = sphi 0, %s20
      %s23 = sphi 0, %s21
      %s24 = sphi 0, %s22
      %s34 = sphi 0, %s36
      %s37 = sphi 0, %s34
      %s38 = sphi 0, %s37
      %s54 = sphi 0, %s38
      %s60 = sphi 0, %s62
      %s63 = sphi 0, %s60
      %s64 = sphi 0, %s63
      %s80 = sphi 0, %s64
      %s86 = sphi 0, %s88
      %s89 = sphi 0, %s86
      %s90 = sphi 0, %s89
      %s106 = sphi 0, %s90
      %s114 = sphi 0, %s116
      %s117 = sphi 0, %s114
      %s118 = sphi 0, %s117
      %s134 = sphi 0, %s118
    $region4: #{tpu_custom_call.1} parent=1 // loop_header_branch
      %15 = sbr.rel (%p13) target = $region8
    $region5: #{tpu_custom_call.1} parent=1 // loop_body
      %s17 = ssub.s32 %s12, 1
      %s18 = ssub.s32 %s12, 2
      %s25 = sadd.s32 1, %s20
      %p26 = scmp.ge.s32.totalorder %s25, 1
      %s27 = scalar_select %p26, 0, %s25
      %s28 = sadd.s32 1, %s19
      %s29 = scalar_select %p26, %s28, %s19
      %p30 = scmp.ge.s32.totalorder %s29, 2
      %s31 = scalar_select %p30, 0, %s29
      %s32 = ssub.s32 %s19, %s31
      %p33 = scmp.eq.s32.totalorder %s32, 0
      %s35 = sadd.s32 %s34, 1
      %s36 = scalar_select %p33, %s34, %s35
      %p39 = pneg %p33
      %p40 = scmp.eq.s32.totalorder %s12, 1
      %p41 = por %p39, %p40
      %p42 = scmp.ne.s32.totalorder %s34, %s37
      %p43 = scmp.eq.s32.totalorder %s12, 0
      %p44 = por %p42, %p43
      %p45 = scmp.ne.s32.totalorder %s34, %s37
      %p46 = scmp.eq.s32.totalorder %s17, 1
      %p47 = por %p45, %p46
      %p48 = scmp.ne.s32.totalorder %s37, %s38
      %p49 = scmp.eq.s32.totalorder %s17, 0
      %p50 = por %p48, %p49
      %p51 = scmp.ne.s32.totalorder %s37, %s38
      %p52 = scmp.eq.s32.totalorder %s18, 1
      %p53 = por %p51, %p52
      %p55 = scmp.ne.s32.totalorder %s38, %s54
      %p56 = scmp.eq.s32.totalorder %s18, 0
      %p57 = por %p55, %p56
      %s58 = ssub.s32 %s20, %s27
      %p59 = scmp.eq.s32.totalorder %s58, 0
      %s61 = sadd.s32 %s60, 1
      %s62 = scalar_select %p59, %s60, %s61
      %p65 = pneg %p59
      %p66 = scmp.eq.s32.totalorder %s12, 1
      %p67 = por %p65, %p66
      %p68 = scmp.ne.s32.totalorder %s60, %s63
      %p69 = scmp.eq.s32.totalorder %s12, 0
      %p70 = por %p68, %p69
      %p71 = scmp.ne.s32.totalorder %s60, %s63
      %p72 = scmp.eq.s32.totalorder %s17, 1
      %p73 = por %p71, %p72
      %p74 = scmp.ne.s32.totalorder %s63, %s64
      %p75 = scmp.eq.s32.totalorder %s17, 0
      %p76 = por %p74, %p75
      %p77 = scmp.ne.s32.totalorder %s63, %s64
      %p78 = scmp.eq.s32.totalorder %s18, 1
      %p79 = por %p77, %p78
      %p81 = scmp.ne.s32.totalorder %s64, %s80
      %p82 = scmp.eq.s32.totalorder %s18, 0
      %p83 = por %p81, %p82
      %s84 = ssub.s32 %s20, %s27
      %p85 = scmp.eq.s32.totalorder %s84, 0
      %s87 = sadd.s32 %s86, 1
      %s88 = scalar_select %p85, %s86, %s87
      %p91 = pneg %p85
      %p92 = scmp.eq.s32.totalorder %s12, 1
      %p93 = por %p91, %p92
      %p94 = scmp.ne.s32.totalorder %s86, %s89
      %p95 = scmp.eq.s32.totalorder %s12, 0
      %p96 = por %p94, %p95
      %p97 = scmp.ne.s32.totalorder %s86, %s89
      %p98 = scmp.eq.s32.totalorder %s17, 1
      %p99 = por %p97, %p98
      %p100 = scmp.ne.s32.totalorder %s89, %s90
      %p101 = scmp.eq.s32.totalorder %s17, 0
      %p102 = por %p100, %p101
      %p103 = scmp.ne.s32.totalorder %s89, %s90
      %p104 = scmp.eq.s32.totalorder %s18, 1
      %p105 = por %p103, %p104
      %p107 = scmp.ne.s32.totalorder %s90, %s106
      %p108 = scmp.eq.s32.totalorder %s18, 0
      %p109 = por %p107, %p108
      %s110 = ssub.s32 %s19, %s31
      %s111 = ssub.s32 %s20, %s27
      %s112 = sor.u32 %s110, %s111
      %p113 = scmp.eq.s32.totalorder %s112, 0
      %s115 = sadd.s32 %s114, 1
      %s116 = scalar_select %p113, %s114, %s115
      %p119 = pneg %p113
      %p120 = scmp.eq.s32.totalorder %s12, 1
      %p121 = por %p119, %p120
      %p122 = scmp.ne.s32.totalorder %s114, %s117
      %p123 = scmp.eq.s32.totalorder %s12, 0
      %p124 = por %p122, %p123
      %p125 = scmp.ne.s32.totalorder %s114, %s117
      %p126 = scmp.eq.s32.totalorder %s17, 1
      %p127 = por %p125, %p126
      %p128 = scmp.ne.s32.totalorder %s117, %s118
      %p129 = scmp.eq.s32.totalorder %s17, 0
      %p130 = por %p128, %p129
      %p131 = scmp.ne.s32.totalorder %s117, %s118
      %p132 = scmp.eq.s32.totalorder %s18, 1
      %p133 = por %p131, %p132
      %p135 = scmp.ne.s32.totalorder %s118, %s134
      %p136 = scmp.eq.s32.totalorder %s18, 0
      %p137 = por %p135, %p136
      %p138 = scmp.le.s32.totalorder 1, %s12
      %p139 = scmp.lt.s32.totalorder %s12, 3
      %p140 = pnand %p138, %p139
      %p141 = pneg %p140
      // Predicated region
      $region9: #{tpu_custom_call.1} parent=5 // pred_check
        _
      $region10: #{tpu_custom_call.1} parent=5 // pred_check_branch
        %143 = sbr.rel (%p140) target = $region12
      $region11: #{tpu_custom_call.1} parent=5 // pred_region
        %s144 = ssub.s32 %s12, 1
        // Predicated region
        $region13: #{tpu_custom_call.1} parent=11 // pred_check
          %p145 = pneg %p76
        $region14: #{tpu_custom_call.1} parent=11 // pred_check_branch
          %147 = sbr.rel (%p145) target = $region16
        $region15: #{tpu_custom_call.1} parent=11 // pred_region
          %s148 = smul.u32 2, %s22
          %p149 = scmp.lt.s32.totalorder %s148, 1
          %s150 = scalar_select %p149, %s148, 1
          %s151 = smul.addr %s150, 8
          %s152 = scalar_lea.vmem %s1, %s151
          %s153 = smul.u32 2, %s22
        $region16: #{tpu_custom_call.1} parent=11 // pred_fallthru
          _
        // Predicated region
        $region17: #{tpu_custom_call.1} parent=11 // pred_check
          %p154 = pneg %p102
        $region18: #{tpu_custom_call.1} parent=11 // pred_check_branch
          %156 = sbr.rel (%p154) target = $region20
        $region19: #{tpu_custom_call.1} parent=11 // pred_region
          %s157 = smul.u32 2, %s22
          %p158 = scmp.lt.s32.totalorder %s157, 1
          %s159 = scalar_select %p158, %s157, 1
          %s160 = scalar_lea.vmem %s2, %s159
          %s161 = smul.u32 2, %s22
        $region20: #{tpu_custom_call.1} parent=11 // pred_fallthru
          _
      $region12: #{tpu_custom_call.1} parent=5 // pred_fallthru
        _
      %p162 = scmp.lt.s32.totalorder %s12, 2
      // Predicated region
      $region21: #{tpu_custom_call.1} parent=5 // pred_check
        %p163 = pneg %p162
      $region22: #{tpu_custom_call.1} parent=5 // pred_check_branch
        %165 = sbr.rel (%p163) target = $region24
      $region23: #{tpu_custom_call.1} parent=5 // pred_region
        // Predicated region
        $region25: #{tpu_custom_call.1} parent=23 // pred_check
          %p166 = pneg %p44
        $region26: #{tpu_custom_call.1} parent=23 // pred_check_branch
          %168 = sbr.rel (%p166) target = $region28
        $region27: #{tpu_custom_call.1} parent=23 // pred_region
          %s169 = smul.u32 32, %s19
          %p170 = scmp.lt.s32.totalorder %s169, 63
          %s171 = scalar_select %p170, %s169, 63
          %s172 = smul.addr %s171, 8
          %s173 = scalar_lea.vmem %s0, %s172
          %s174 = smul.u32 32, %s19
        $region28: #{tpu_custom_call.1} parent=23 // pred_fallthru
          _
      $region24: #{tpu_custom_call.1} parent=5 // pred_fallthru
        _
      %p175 = scmp.le.s32.totalorder 1, %s12
      %p176 = scmp.lt.s32.totalorder %s12, 3
      %p177 = pnand %p175, %p176
      %p178 = pneg %p177
      // Predicated region
      $region29: #{tpu_custom_call.1} parent=5 // pred_check
        _
      $region30: #{tpu_custom_call.1} parent=5 // pred_check_branch
        %180 = sbr.rel (%p177) target = $region32
      $region31: #{tpu_custom_call.1} parent=5 // pred_region
        %s181 = ssub.s32 %s12, 1
        %s182 = smul.u32 32, %s21
        %p183 = scmp.lt.s32.totalorder %s182, 63
        %s184 = scalar_select %p183, %s182, 63
        %s185 = smul.addr %s184, 8
        %s186 = scalar_lea.vmem %s0, %s185
        %p187 = pneg %p50
        %p188 = pneg %p47
        %s189 = smul.u32 2, %s22
        %p190 = scmp.lt.s32.totalorder %s189, 1
        %s191 = scalar_select %p190, %s189, 1
        %s192 = smul.addr %s191, 8
        %s193 = scalar_lea.vmem %s1, %s192
        %p194 = pneg %p76
        %p195 = pneg %p73
        %s196 = smul.u32 2, %s22
        %p197 = scmp.lt.s32.totalorder %s196, 1
        %s198 = scalar_select %p197, %s196, 1
        %s199 = scalar_lea.vmem %s2, %s198
        %p200 = pneg %p102
        %p201 = pneg %p99
        %p202 = pneg %p130
        %p203 = pneg %p127
        %s204 = sand.u32 %s117, 1
        %s205 = scalar_lea.sflag [#allocation3], %s204
        %s206 = sand.u32 %s117, 1
        %s207 = smul.addr %s206, 512
        %s208 = scalar_lea.vmem [#allocation2], %s207
        %s209 = smul.u32 32, %s21
        %p210 = scmp.lt.s32.totalorder %s209, 63
        %s211 = scalar_select %p210, %s209, 63
        %s212 = smul.addr %s211, 8
        %s213 = scalar_lea.vmem %s0, %s212
        %s214 = smul.u32 32, %s21
        %s215 = smul.u32 2, %s22
        %p216 = scmp.lt.s32.totalorder %s215, 1
        %s217 = scalar_select %p216, %s215, 1
        %s218 = smul.addr %s217, 8
        %s219 = scalar_lea.vmem %s1, %s218
        %s220 = smul.u32 2, %s22
        %s221 = smul.u32 2, %s22
        %p222 = scmp.lt.s32.totalorder %s221, 1
        %s223 = scalar_select %p222, %s221, 1
        %s224 = scalar_lea.vmem %s2, %s223
        %s225 = smul.u32 2, %s22
        %s226 = smul.u32 32, %s21
        %s227 = smul.u32 2, %s22
        %v228 = vld [vmem:[%s213] sm:$0xff]
        %v229 = vld [vmem:[%s213 + $0x8] sm:$0xff]
        %v230 = vld [vmem:[%s213 + $0x10] sm:$0xff]
        %v231 = vld [vmem:[%s213 + $0x18] sm:$0xff]
        %v232 = vld [vmem:[%s213 + $0x20] sm:$0xff]
        %v233 = vld [vmem:[%s213 + $0x28] sm:$0xff]
        %v234 = vld [vmem:[%s213 + $0x30] sm:$0xff]
        %v235 = vld [vmem:[%s213 + $0x38] sm:$0xff]
        %v236 = vld [vmem:[%s213 + $0x40] sm:$0xff]
        %v237 = vld [vmem:[%s213 + $0x48] sm:$0xff]
        %v238 = vld [vmem:[%s213 + $0x50] sm:$0xff]
        %v239 = vld [vmem:[%s213 + $0x58] sm:$0xff]
        %v240 = vld [vmem:[%s213 + $0x60] sm:$0xff]
        %v241 = vld [vmem:[%s213 + $0x68] sm:$0xff]
        %v242 = vld [vmem:[%s213 + $0x70] sm:$0xff]
        %v243 = vld [vmem:[%s213 + $0x78] sm:$0xff]
        %v244 = vld [vmem:[%s213 + $0x80] sm:$0xff]
        %v245 = vld [vmem:[%s213 + $0x88] sm:$0xff]
        %v246 = vld [vmem:[%s213 + $0x90] sm:$0xff]
        %v247 = vld [vmem:[%s213 + $0x98] sm:$0xff]
        %v248 = vld [vmem:[%s213 + $0xa0] sm:$0xff]
        %v249 = vld [vmem:[%s213 + $0xa8] sm:$0xff]
        %v250 = vld [vmem:[%s213 + $0xb0] sm:$0xff]
        %v251 = vld [vmem:[%s213 + $0xb8] sm:$0xff]
        %v252 = vld [vmem:[%s213 + $0xc0] sm:$0xff]
        %v253 = vld [vmem:[%s213 + $0xc8] sm:$0xff]
        %v254 = vld [vmem:[%s213 + $0xd0] sm:$0xff]
        %v255 = vld [vmem:[%s213 + $0xd8] sm:$0xff]
        %v256 = vld [vmem:[%s213 + $0xe0] sm:$0xff]
        %v257 = vld [vmem:[%s213 + $0xe8] sm:$0xff]
        %v258 = vld [vmem:[%s213 + $0xf0] sm:$0xff]
        %v259 = vld [vmem:[%s213 + $0xf8] sm:$0xff]
        %v260 = vld [vmem:[%s219] sm:$0xff]
        %v261 = vld [vmem:[%s219 + $0x8] sm:$0xff]
        %v262 = vld [vmem:[%s219 + $0x10] sm:$0xff]
        %v263 = vld [vmem:[%s219 + $0x18] sm:$0xff]
        %v264 = vld [vmem:[%s219 + $0x20] sm:$0xff]
        %v265 = vld [vmem:[%s219 + $0x28] sm:$0xff]
        %v266 = vld [vmem:[%s219 + $0x30] sm:$0xff]
        %v267 = vld [vmem:[%s219 + $0x38] sm:$0xff]
        %v268 = vld [vmem:[%s219 + $0x40] sm:$0x3]
        %v269 = vld [vmem:[%s219 + $0x48] sm:$0x3]
        %vm270 = vcmask 277504
        %v272 = vsel %vm270, %v228, 0
        %v275 = vsel %vm270, %v229, 0
        %v278 = vsel %vm270, %v230, 0
        %v281 = vsel %vm270, %v231, 0
        %v284 = vsel %vm270, %v232, 0
        %v287 = vsel %vm270, %v233, 0
        %v290 = vsel %vm270, %v234, 0
        %v293 = vsel %vm270, %v235, 0
        %v296 = vsel %vm270, %v236, 0
        %v299 = vsel %vm270, %v237, 0
        %v302 = vsel %vm270, %v238, 0
        %v305 = vsel %vm270, %v239, 0
        %v308 = vsel %vm270, %v240, 0
        %v311 = vsel %vm270, %v241, 0
        %v314 = vsel %vm270, %v242, 0
        %v317 = vsel %vm270, %v243, 0
        %v320 = vsel %vm270, %v244, 0
        %v323 = vsel %vm270, %v245, 0
        %v326 = vsel %vm270, %v246, 0
        %v329 = vsel %vm270, %v247, 0
        %v332 = vsel %vm270, %v248, 0
        %v335 = vsel %vm270, %v249, 0
        %v338 = vsel %vm270, %v250, 0
        %v341 = vsel %vm270, %v251, 0
        %v344 = vsel %vm270, %v252, 0
        %v347 = vsel %vm270, %v253, 0
        %v350 = vsel %vm270, %v254, 0
        %v353 = vsel %vm270, %v255, 0
        %v356 = vsel %vm270, %v256, 0
        %v359 = vsel %vm270, %v257, 0
        %v362 = vsel %vm270, %v258, 0
        %v365 = vsel %vm270, %v259, 0
        %vm367 = vcmask 1041408
        %v369 = vsel %vm367, %v268, 0
        %v372 = vsel %vm367, %v269, 0
        %374 = vmatprep.subr.mxu0 0.0
        %375 = vmatpush1.msra.mxu0 0.0
        %376 = vmatprep.subr.mxu0 0.0
        %377 = vmatpush1.msra.mxu0 0.0
        %378 = vmatprep.subr.mxu0 0.0
        %379 = vmatpush1.msra.mxu0 0.0
        %380 = vmatprep.subr.mxu0 0.0
        %381 = vmatpush1.msra.mxu0 0.0
        %382 = vmatprep.subr.mxu0 0.0
        %383 = vmatpush1.msra.mxu0 0.0
        %384 = vmatprep.subr.mxu0 0.0
        %385 = vmatpush1.msra.mxu0 0.0
        %386 = vmatprep.subr.mxu0 0.0
        %387 = vmatpush1.msra.mxu0 0.0
        %388 = vmatprep.subr.mxu0 0.0
        %389 = vmatpush1.msra.mxu0 0.0
        %390 = vmatprep.subr.mxu0 0.0
        %391 = vmatpush1.msra.mxu0 0.0
        %392 = vmatprep.subr.mxu0 0.0
        %393 = vmatpush1.msra.mxu0 0.0
        %394 = vmatprep.subr.mxu0 0.0
        %395 = vmatpush1.msra.mxu0 0.0
        %396 = vmatprep.subr.mxu0 %v372
        %397 = vmatpush1.msra.mxu0 %v369
        %398 = vmatprep.subr.mxu0 %v267
        %399 = vmatpush1.msra.mxu0 %v266
        %400 = vmatprep.subr.mxu0 %v265
        %401 = vmatpush1.msra.mxu0 %v264
        %402 = vmatprep.subr.mxu0 %v263
        %403 = vmatpush1.msra.mxu0 %v262
        %404 = vmatprep.subr.mxu0 %v261
        %405 = vmatpush1.msra.mxu0 %v260
        %406 = vmatprep.subr.mxu0 0.0
        %407 = vmatpush2.msra.mxu0 0.0
        %408 = vmatprep.subr.mxu0 0.0
        %409 = vmatpush2.msra.mxu0 0.0
        %410 = vmatprep.subr.mxu0 0.0
        %411 = vmatpush2.msra.mxu0 0.0
        %412 = vmatprep.subr.mxu0 0.0
        %413 = vmatpush2.msra.mxu0 0.0
        %414 = vmatprep.subr.mxu0 0.0
        %415 = vmatpush2.msra.mxu0 0.0
        %416 = vmatprep.subr.mxu0 0.0
        %417 = vmatpush2.msra.mxu0 0.0
        %418 = vmatprep.subr.mxu0 0.0
        %419 = vmatpush2.msra.mxu0 0.0
        %420 = vmatprep.subr.mxu0 0.0
        %421 = vmatpush2.msra.mxu0 0.0
        %422 = vmatprep.subr.mxu0 0.0
        %423 = vmatpush2.msra.mxu0 0.0
        %424 = vmatprep.subr.mxu0 0.0
        %425 = vmatpush2.msra.mxu0 0.0
        %426 = vmatprep.subr.mxu0 0.0
        %427 = vmatpush2.msra.mxu0 0.0
        %428 = vmatprep.subr.mxu0 0.0
        %429 = vmatpush2.msra.mxu0 0.0
        %430 = vmatprep.subr.mxu0 0.0
        %431 = vmatpush2.msra.mxu0 0.0
        %432 = vmatprep.subr.mxu0 0.0
        %433 = vmatpush2.msra.mxu0 0.0
        %434 = vmatprep.subr.mxu0 0.0
        %435 = vmatpush2.msra.mxu0 0.0
        %436 = vmatprep.subr.mxu0 0.0
        %437 = vmatpush2.msra.mxu0 0.0
        %438 = vmatprep.mubr.f32.mxu0 0.0
        %439 = vmatmul.mubr.f32.gmra.mxu0 %v272
        %v440 = vpop.f32.mrf.mxu0
        %v441 = vadd.f32 0.0, %v440
        %v442 = vpop.f32.mrf.mxu0
        %v443 = vadd.f32 0.0, %v442
        %444 = vmatprep.mubr.f32.mxu0 0.0
        %445 = vmatmul.mubr.f32.gmra.mxu0 %v275
        %v446 = vpop.f32.mrf.mxu0
        %v447 = vadd.f32 0.0, %v446
        %v448 = vpop.f32.mrf.mxu0
        %v449 = vadd.f32 0.0, %v448
        %450 = vmatprep.mubr.f32.mxu0 0.0
        %451 = vmatmul.mubr.f32.gmra.mxu0 %v278
        %v452 = vpop.f32.mrf.mxu0
        %v453 = vadd.f32 0.0, %v452
        %v454 = vpop.f32.mrf.mxu0
        %v455 = vadd.f32 0.0, %v454
        %456 = vmatprep.mubr.f32.mxu0 0.0
        %457 = vmatmul.mubr.f32.gmra.mxu0 %v281
        %v458 = vpop.f32.mrf.mxu0
        %v459 = vadd.f32 0.0, %v458
        %v460 = vpop.f32.mrf.mxu0
        %v461 = vadd.f32 0.0, %v460
        %462 = vmatprep.mubr.f32.mxu0 0.0
        %463 = vmatmul.mubr.f32.gmra.mxu0 %v284
        %v464 = vpop.f32.mrf.mxu0
        %v465 = vadd.f32 0.0, %v464
        %v466 = vpop.f32.mrf.mxu0
        %v467 = vadd.f32 0.0, %v466
        %468 = vmatprep.mubr.f32.mxu0 0.0
        %469 = vmatmul.mubr.f32.gmra.mxu0 %v287
        %v470 = vpop.f32.mrf.mxu0
        %v471 = vadd.f32 0.0, %v470
        %v472 = vpop.f32.mrf.mxu0
        %v473 = vadd.f32 0.0, %v472
        %474 = vmatprep.mubr.f32.mxu0 0.0
        %475 = vmatmul.mubr.f32.gmra.mxu0 %v290
        %v476 = vpop.f32.mrf.mxu0
        %v477 = vadd.f32 0.0, %v476
        %v478 = vpop.f32.mrf.mxu0
        %v479 = vadd.f32 0.0, %v478
        %480 = vmatprep.mubr.f32.mxu0 0.0
        %481 = vmatmul.mubr.f32.gmra.mxu0 %v293
        %v482 = vpop.f32.mrf.mxu0
        %v483 = vadd.f32 0.0, %v482
        %v484 = vpop.f32.mrf.mxu0
        %v485 = vadd.f32 0.0, %v484
        %486 = vmatprep.mubr.f32.mxu0 0.0
        %487 = vmatmul.mubr.f32.gmra.mxu0 %v296
        %v488 = vpop.f32.mrf.mxu0
        %v489 = vadd.f32 0.0, %v488
        %v490 = vpop.f32.mrf.mxu0
        %v491 = vadd.f32 0.0, %v490
        %492 = vmatprep.mubr.f32.mxu0 0.0
        %493 = vmatmul.mubr.f32.gmra.mxu0 %v299
        %v494 = vpop.f32.mrf.mxu0
        %v495 = vadd.f32 0.0, %v494
        %v496 = vpop.f32.mrf.mxu0
        %v497 = vadd.f32 0.0, %v496
        %498 = vmatprep.mubr.f32.mxu0 0.0
        %499 = vmatmul.mubr.f32.gmra.mxu0 %v302
        %v500 = vpop.f32.mrf.mxu0
        %v501 = vadd.f32 0.0, %v500
        %v502 = vpop.f32.mrf.mxu0
        %v503 = vadd.f32 0.0, %v502
        %504 = vmatprep.mubr.f32.mxu0 0.0
        %505 = vmatmul.mubr.f32.gmra.mxu0 %v305
        %v506 = vpop.f32.mrf.mxu0
        %v507 = vadd.f32 0.0, %v506
        %v508 = vpop.f32.mrf.mxu0
        %v509 = vadd.f32 0.0, %v508
        %510 = vmatprep.mubr.f32.mxu0 0.0
        %511 = vmatmul.mubr.f32.gmra.mxu0 %v308
        %v512 = vpop.f32.mrf.mxu0
        %v513 = vadd.f32 0.0, %v512
        %v514 = vpop.f32.mrf.mxu0
        %v515 = vadd.f32 0.0, %v514
        %516 = vmatprep.mubr.f32.mxu0 0.0
        %517 = vmatmul.mubr.f32.gmra.mxu0 %v311
        %v518 = vpop.f32.mrf.mxu0
        %v519 = vadd.f32 0.0, %v518
        %v520 = vpop.f32.mrf.mxu0
        %v521 = vadd.f32 0.0, %v520
        %522 = vmatprep.mubr.f32.mxu0 0.0
        %523 = vmatmul.mubr.f32.gmra.mxu0 %v314
        %v524 = vpop.f32.mrf.mxu0
        %v525 = vadd.f32 0.0, %v524
        %v526 = vpop.f32.mrf.mxu0
        %v527 = vadd.f32 0.0, %v526
        %528 = vmatprep.mubr.f32.mxu0 0.0
        %529 = vmatmul.mubr.f32.gmra.mxu0 %v317
        %v530 = vpop.f32.mrf.mxu0
        %v531 = vadd.f32 0.0, %v530
        %v532 = vpop.f32.mrf.mxu0
        %v533 = vadd.f32 0.0, %v532
        %534 = vmatprep.mubr.f32.mxu0 0.0
        %535 = vmatmul.mubr.f32.gmra.mxu0 %v320
        %v536 = vpop.f32.mrf.mxu0
        %v537 = vadd.f32 0.0, %v536
        %v538 = vpop.f32.mrf.mxu0
        %v539 = vadd.f32 0.0, %v538
        %540 = vmatprep.mubr.f32.mxu0 0.0
        %541 = vmatmul.mubr.f32.gmra.mxu0 %v323
        %v542 = vpop.f32.mrf.mxu0
        %v543 = vadd.f32 0.0, %v542
        %v544 = vpop.f32.mrf.mxu0
        %v545 = vadd.f32 0.0, %v544
        %546 = vmatprep.mubr.f32.mxu0 0.0
        %547 = vmatmul.mubr.f32.gmra.mxu0 %v326
        %v548 = vpop.f32.mrf.mxu0
        %v549 = vadd.f32 0.0, %v548
        %v550 = vpop.f32.mrf.mxu0
        %v551 = vadd.f32 0.0, %v550
        %552 = vmatprep.mubr.f32.mxu0 0.0
        %553 = vmatmul.mubr.f32.gmra.mxu0 %v329
        %v554 = vpop.f32.mrf.mxu0
        %v555 = vadd.f32 0.0, %v554
        %v556 = vpop.f32.mrf.mxu0
        %v557 = vadd.f32 0.0, %v556
        %558 = vmatprep.mubr.f32.mxu0 0.0
        %559 = vmatmul.mubr.f32.gmra.mxu0 %v332
        %v560 = vpop.f32.mrf.mxu0
        %v561 = vadd.f32 0.0, %v560
        %v562 = vpop.f32.mrf.mxu0
        %v563 = vadd.f32 0.0, %v562
        %564 = vmatprep.mubr.f32.mxu0 0.0
        %565 = vmatmul.mubr.f32.gmra.mxu0 %v335
        %v566 = vpop.f32.mrf.mxu0
        %v567 = vadd.f32 0.0, %v566
        %v568 = vpop.f32.mrf.mxu0
        %v569 = vadd.f32 0.0, %v568
        %570 = vmatprep.mubr.f32.mxu0 0.0
        %571 = vmatmul.mubr.f32.gmra.mxu0 %v338
        %v572 = vpop.f32.mrf.mxu0
        %v573 = vadd.f32 0.0, %v572
        %v574 = vpop.f32.mrf.mxu0
        %v575 = vadd.f32 0.0, %v574
        %576 = vmatprep.mubr.f32.mxu0 0.0
        %577 = vmatmul.mubr.f32.gmra.mxu0 %v341
        %v578 = vpop.f32.mrf.mxu0
        %v579 = vadd.f32 0.0, %v578
        %v580 = vpop.f32.mrf.mxu0
        %v581 = vadd.f32 0.0, %v580
        %582 = vmatprep.mubr.f32.mxu0 0.0
        %583 = vmatmul.mubr.f32.gmra.mxu0 %v344
        %v584 = vpop.f32.mrf.mxu0
        %v585 = vadd.f32 0.0, %v584
        %v586 = vpop.f32.mrf.mxu0
        %v587 = vadd.f32 0.0, %v586
        %588 = vmatprep.mubr.f32.mxu0 0.0
        %589 = vmatmul.mubr.f32.gmra.mxu0 %v347
        %v590 = vpop.f32.mrf.mxu0
        %v591 = vadd.f32 0.0, %v590
        %v592 = vpop.f32.mrf.mxu0
        %v593 = vadd.f32 0.0, %v592
        %594 = vmatprep.mubr.f32.mxu0 0.0
        %595 = vmatmul.mubr.f32.gmra.mxu0 %v350
        %v596 = vpop.f32.mrf.mxu0
        %v597 = vadd.f32 0.0, %v596
        %v598 = vpop.f32.mrf.mxu0
        %v599 = vadd.f32 0.0, %v598
        %600 = vmatprep.mubr.f32.mxu0 0.0
        %601 = vmatmul.mubr.f32.gmra.mxu0 %v353
        %v602 = vpop.f32.mrf.mxu0
        %v603 = vadd.f32 0.0, %v602
        %v604 = vpop.f32.mrf.mxu0
        %v605 = vadd.f32 0.0, %v604
        %606 = vmatprep.mubr.f32.mxu0 0.0
        %607 = vmatmul.mubr.f32.gmra.mxu0 %v356
        %v608 = vpop.f32.mrf.mxu0
        %v609 = vadd.f32 0.0, %v608
        %v610 = vpop.f32.mrf.mxu0
        %v611 = vadd.f32 0.0, %v610
        %612 = vmatprep.mubr.f32.mxu0 0.0
        %613 = vmatmul.mubr.f32.gmra.mxu0 %v359
        %v614 = vpop.f32.mrf.mxu0
        %v615 = vadd.f32 0.0, %v614
        %v616 = vpop.f32.mrf.mxu0
        %v617 = vadd.f32 0.0, %v616
        %618 = vmatprep.mubr.f32.mxu0 0.0
        %619 = vmatmul.mubr.f32.gmra.mxu0 %v362
        %v620 = vpop.f32.mrf.mxu0
        %v621 = vadd.f32 0.0, %v620
        %v622 = vpop.f32.mrf.mxu0
        %v623 = vadd.f32 0.0, %v622
        %624 = vmatprep.mubr.f32.mxu0 0.0
        %625 = vmatmul.mubr.f32.gmra.mxu0 %v365
        %v626 = vpop.f32.mrf.mxu0
        %v627 = vadd.f32 0.0, %v626
        %v628 = vpop.f32.mrf.mxu0
        %v629 = vadd.f32 0.0, %v628
        %630 = vdwg.mxu0
        %v631 = vmax.f32 %v441, 0.0
        %v632 = vmax.f32 %v443, 0.0
        %v633 = vmax.f32 %v447, 0.0
        %v634 = vmax.f32 %v449, 0.0
        %v635 = vmax.f32 %v453, 0.0
        %v636 = vmax.f32 %v455, 0.0
        %v637 = vmax.f32 %v459, 0.0
        %v638 = vmax.f32 %v461, 0.0
        %v639 = vmax.f32 %v465, 0.0
        %v640 = vmax.f32 %v467, 0.0
        %v641 = vmax.f32 %v471, 0.0
        %v642 = vmax.f32 %v473, 0.0
        %v643 = vmax.f32 %v477, 0.0
        %v644 = vmax.f32 %v479, 0.0
        %v645 = vmax.f32 %v483, 0.0
        %v646 = vmax.f32 %v485, 0.0
        %v647 = vmax.f32 %v489, 0.0
        %v648 = vmax.f32 %v491, 0.0
        %v649 = vmax.f32 %v495, 0.0
        %v650 = vmax.f32 %v497, 0.0
        %v651 = vmax.f32 %v501, 0.0
        %v652 = vmax.f32 %v503, 0.0
        %v653 = vmax.f32 %v507, 0.0
        %v654 = vmax.f32 %v509, 0.0
        %v655 = vmax.f32 %v513, 0.0
        %v656 = vmax.f32 %v515, 0.0
        %v657 = vmax.f32 %v519, 0.0
        %v658 = vmax.f32 %v521, 0.0
        %v659 = vmax.f32 %v525, 0.0
        %v660 = vmax.f32 %v527, 0.0
        %v661 = vmax.f32 %v531, 0.0
        %v662 = vmax.f32 %v533, 0.0
        %v663 = vmax.f32 %v537, 0.0
        %v664 = vmax.f32 %v539, 0.0
        %v665 = vmax.f32 %v543, 0.0
        %v666 = vmax.f32 %v545, 0.0
        %v667 = vmax.f32 %v549, 0.0
        %v668 = vmax.f32 %v551, 0.0
        %v669 = vmax.f32 %v555, 0.0
        %v670 = vmax.f32 %v557, 0.0
        %v671 = vmax.f32 %v561, 0.0
        %v672 = vmax.f32 %v563, 0.0
        %v673 = vmax.f32 %v567, 0.0
        %v674 = vmax.f32 %v569, 0.0
        %v675 = vmax.f32 %v573, 0.0
        %v676 = vmax.f32 %v575, 0.0
        %v677 = vmax.f32 %v579, 0.0
        %v678 = vmax.f32 %v581, 0.0
        %v679 = vmax.f32 %v585, 0.0
        %v680 = vmax.f32 %v587, 0.0
        %v681 = vmax.f32 %v591, 0.0
        %v682 = vmax.f32 %v593, 0.0
        %v683 = vmax.f32 %v597, 0.0
        %v684 = vmax.f32 %v599, 0.0
        %v685 = vmax.f32 %v603, 0.0
        %v686 = vmax.f32 %v605, 0.0
        %v687 = vmax.f32 %v609, 0.0
        %v688 = vmax.f32 %v611, 0.0
        %v689 = vmax.f32 %v615, 0.0
        %v690 = vmax.f32 %v617, 0.0
        %v691 = vmax.f32 %v621, 0.0
        %v692 = vmax.f32 %v623, 0.0
        %v693 = vmax.f32 %v627, 0.0
        %v694 = vmax.f32 %v629, 0.0
        %v695 = vrsqrt.pop %v631
        %v696 = vmul.f32 %v631, %v695
        %vm697 = vcmp.eq.f32.partialorder %v631, inf
        %v698 = vsel %vm697, %v631, %v696
        %vm699 = vcmp.eq.f32.partialorder %v631, 0.0
        %v700 = vand.u32 %v631, 2147483648
        %v701 = vsel %vm699, %v700, %v698
        %v702 = vrsqrt.pop %v632
        %v703 = vmul.f32 %v632, %v702
        %vm704 = vcmp.eq.f32.partialorder %v632, inf
        %v705 = vsel %vm704, %v632, %v703
        %vm706 = vcmp.eq.f32.partialorder %v632, 0.0
        %v707 = vand.u32 %v632, 2147483648
        %v708 = vsel %vm706, %v707, %v705
        %v709 = vrsqrt.pop %v633
        %v710 = vmul.f32 %v633, %v709
        %vm711 = vcmp.eq.f32.partialorder %v633, inf
        %v712 = vsel %vm711, %v633, %v710
        %vm713 = vcmp.eq.f32.partialorder %v633, 0.0
        %v714 = vand.u32 %v633, 2147483648
        %v715 = vsel %vm713, %v714, %v712
        %v716 = vrsqrt.pop %v634
        %v717 = vmul.f32 %v634, %v716
        %vm718 = vcmp.eq.f32.partialorder %v634, inf
        %v719 = vsel %vm718, %v634, %v717
        %vm720 = vcmp.eq.f32.partialorder %v634, 0.0
        %v721 = vand.u32 %v634, 2147483648
        %v722 = vsel %vm720, %v721, %v719
        %v723 = vrsqrt.pop %v635
        %v724 = vmul.f32 %v635, %v723
        %vm725 = vcmp.eq.f32.partialorder %v635, inf
        %v726 = vsel %vm725, %v635, %v724
        %vm727 = vcmp.eq.f32.partialorder %v635, 0.0
        %v728 = vand.u32 %v635, 2147483648
        %v729 = vsel %vm727, %v728, %v726
        %v730 = vrsqrt.pop %v636
        %v731 = vmul.f32 %v636, %v730
        %vm732 = vcmp.eq.f32.partialorder %v636, inf
        %v733 = vsel %vm732, %v636, %v731
        %vm734 = vcmp.eq.f32.partialorder %v636, 0.0
        %v735 = vand.u32 %v636, 2147483648
        %v736 = vsel %vm734, %v735, %v733
        %v737 = vrsqrt.pop %v637
        %v738 = vmul.f32 %v637, %v737
        %vm739 = vcmp.eq.f32.partialorder %v637, inf
        %v740 = vsel %vm739, %v637, %v738
        %vm741 = vcmp.eq.f32.partialorder %v637, 0.0
        %v742 = vand.u32 %v637, 2147483648
        %v743 = vsel %vm741, %v742, %v740
        %v744 = vrsqrt.pop %v638
        %v745 = vmul.f32 %v638, %v744
        %vm746 = vcmp.eq.f32.partialorder %v638, inf
        %v747 = vsel %vm746, %v638, %v745
        %vm748 = vcmp.eq.f32.partialorder %v638, 0.0
        %v749 = vand.u32 %v638, 2147483648
        %v750 = vsel %vm748, %v749, %v747
        %v751 = vrsqrt.pop %v639
        %v752 = vmul.f32 %v639, %v751
        %vm753 = vcmp.eq.f32.partialorder %v639, inf
        %v754 = vsel %vm753, %v639, %v752
        %vm755 = vcmp.eq.f32.partialorder %v639, 0.0
        %v756 = vand.u32 %v639, 2147483648
        %v757 = vsel %vm755, %v756, %v754
        %v758 = vrsqrt.pop %v640
        %v759 = vmul.f32 %v640, %v758
        %vm760 = vcmp.eq.f32.partialorder %v640, inf
        %v761 = vsel %vm760, %v640, %v759
        %vm762 = vcmp.eq.f32.partialorder %v640, 0.0
        %v763 = vand.u32 %v640, 2147483648
        %v764 = vsel %vm762, %v763, %v761
        %v765 = vrsqrt.pop %v641
        %v766 = vmul.f32 %v641, %v765
        %vm767 = vcmp.eq.f32.partialorder %v641, inf
        %v768 = vsel %vm767, %v641, %v766
        %vm769 = vcmp.eq.f32.partialorder %v641, 0.0
        %v770 = vand.u32 %v641, 2147483648
        %v771 = vsel %vm769, %v770, %v768
        %v772 = vrsqrt.pop %v642
        %v773 = vmul.f32 %v642, %v772
        %vm774 = vcmp.eq.f32.partialorder %v642, inf
        %v775 = vsel %vm774, %v642, %v773
        %vm776 = vcmp.eq.f32.partialorder %v642, 0.0
        %v777 = vand.u32 %v642, 2147483648
        %v778 = vsel %vm776, %v777, %v775
        %v779 = vrsqrt.pop %v643
        %v780 = vmul.f32 %v643, %v779
        %vm781 = vcmp.eq.f32.partialorder %v643, inf
        %v782 = vsel %vm781, %v643, %v780
        %vm783 = vcmp.eq.f32.partialorder %v643, 0.0
        %v784 = vand.u32 %v643, 2147483648
        %v785 = vsel %vm783, %v784, %v782
        %v786 = vrsqrt.pop %v644
        %v787 = vmul.f32 %v644, %v786
        %vm788 = vcmp.eq.f32.partialorder %v644, inf
        %v789 = vsel %vm788, %v644, %v787
        %vm790 = vcmp.eq.f32.partialorder %v644, 0.0
        %v791 = vand.u32 %v644, 2147483648
        %v792 = vsel %vm790, %v791, %v789
        %v793 = vrsqrt.pop %v645
        %v794 = vmul.f32 %v645, %v793
        %vm795 = vcmp.eq.f32.partialorder %v645, inf
        %v796 = vsel %vm795, %v645, %v794
        %vm797 = vcmp.eq.f32.partialorder %v645, 0.0
        %v798 = vand.u32 %v645, 2147483648
        %v799 = vsel %vm797, %v798, %v796
        %v800 = vrsqrt.pop %v646
        %v801 = vmul.f32 %v646, %v800
        %vm802 = vcmp.eq.f32.partialorder %v646, inf
        %v803 = vsel %vm802, %v646, %v801
        %vm804 = vcmp.eq.f32.partialorder %v646, 0.0
        %v805 = vand.u32 %v646, 2147483648
        %v806 = vsel %vm804, %v805, %v803
        %v807 = vrsqrt.pop %v647
        %v808 = vmul.f32 %v647, %v807
        %vm809 = vcmp.eq.f32.partialorder %v647, inf
        %v810 = vsel %vm809, %v647, %v808
        %vm811 = vcmp.eq.f32.partialorder %v647, 0.0
        %v812 = vand.u32 %v647, 2147483648
        %v813 = vsel %vm811, %v812, %v810
        %v814 = vrsqrt.pop %v648
        %v815 = vmul.f32 %v648, %v814
        %vm816 = vcmp.eq.f32.partialorder %v648, inf
        %v817 = vsel %vm816, %v648, %v815
        %vm818 = vcmp.eq.f32.partialorder %v648, 0.0
        %v819 = vand.u32 %v648, 2147483648
        %v820 = vsel %vm818, %v819, %v817
        %v821 = vrsqrt.pop %v649
        %v822 = vmul.f32 %v649, %v821
        %vm823 = vcmp.eq.f32.partialorder %v649, inf
        %v824 = vsel %vm823, %v649, %v822
        %vm825 = vcmp.eq.f32.partialorder %v649, 0.0
        %v826 = vand.u32 %v649, 2147483648
        %v827 = vsel %vm825, %v826, %v824
        %v828 = vrsqrt.pop %v650
        %v829 = vmul.f32 %v650, %v828
        %vm830 = vcmp.eq.f32.partialorder %v650, inf
        %v831 = vsel %vm830, %v650, %v829
        %vm832 = vcmp.eq.f32.partialorder %v650, 0.0
        %v833 = vand.u32 %v650, 2147483648
        %v834 = vsel %vm832, %v833, %v831
        %v835 = vrsqrt.pop %v651
        %v836 = vmul.f32 %v651, %v835
        %vm837 = vcmp.eq.f32.partialorder %v651, inf
        %v838 = vsel %vm837, %v651, %v836
        %vm839 = vcmp.eq.f32.partialorder %v651, 0.0
        %v840 = vand.u32 %v651, 2147483648
        %v841 = vsel %vm839, %v840, %v838
        %v842 = vrsqrt.pop %v652
        %v843 = vmul.f32 %v652, %v842
        %vm844 = vcmp.eq.f32.partialorder %v652, inf
        %v845 = vsel %vm844, %v652, %v843
        %vm846 = vcmp.eq.f32.partialorder %v652, 0.0
        %v847 = vand.u32 %v652, 2147483648
        %v848 = vsel %vm846, %v847, %v845
        %v849 = vrsqrt.pop %v653
        %v850 = vmul.f32 %v653, %v849
        %vm851 = vcmp.eq.f32.partialorder %v653, inf
        %v852 = vsel %vm851, %v653, %v850
        %vm853 = vcmp.eq.f32.partialorder %v653, 0.0
        %v854 = vand.u32 %v653, 2147483648
        %v855 = vsel %vm853, %v854, %v852
        %v856 = vrsqrt.pop %v654
        %v857 = vmul.f32 %v654, %v856
        %vm858 = vcmp.eq.f32.partialorder %v654, inf
        %v859 = vsel %vm858, %v654, %v857
        %vm860 = vcmp.eq.f32.partialorder %v654, 0.0
        %v861 = vand.u32 %v654, 2147483648
        %v862 = vsel %vm860, %v861, %v859
        %v863 = vrsqrt.pop %v655
        %v864 = vmul.f32 %v655, %v863
        %vm865 = vcmp.eq.f32.partialorder %v655, inf
        %v866 = vsel %vm865, %v655, %v864
        %vm867 = vcmp.eq.f32.partialorder %v655, 0.0
        %v868 = vand.u32 %v655, 2147483648
        %v869 = vsel %vm867, %v868, %v866
        %v870 = vrsqrt.pop %v656
        %v871 = vmul.f32 %v656, %v870
        %vm872 = vcmp.eq.f32.partialorder %v656, inf
        %v873 = vsel %vm872, %v656, %v871
        %vm874 = vcmp.eq.f32.partialorder %v656, 0.0
        %v875 = vand.u32 %v656, 2147483648
        %v876 = vsel %vm874, %v875, %v873
        %v877 = vrsqrt.pop %v657
        %v878 = vmul.f32 %v657, %v877
        %vm879 = vcmp.eq.f32.partialorder %v657, inf
        %v880 = vsel %vm879, %v657, %v878
        %vm881 = vcmp.eq.f32.partialorder %v657, 0.0
        %v882 = vand.u32 %v657, 2147483648
        %v883 = vsel %vm881, %v882, %v880
        %v884 = vrsqrt.pop %v658
        %v885 = vmul.f32 %v658, %v884
        %vm886 = vcmp.eq.f32.partialorder %v658, inf
        %v887 = vsel %vm886, %v658, %v885
        %vm888 = vcmp.eq.f32.partialorder %v658, 0.0
        %v889 = vand.u32 %v658, 2147483648
        %v890 = vsel %vm888, %v889, %v887
        %v891 = vrsqrt.pop %v659
        %v892 = vmul.f32 %v659, %v891
        %vm893 = vcmp.eq.f32.partialorder %v659, inf
        %v894 = vsel %vm893, %v659, %v892
        %vm895 = vcmp.eq.f32.partialorder %v659, 0.0
        %v896 = vand.u32 %v659, 2147483648
        %v897 = vsel %vm895, %v896, %v894
        %v898 = vrsqrt.pop %v660
        %v899 = vmul.f32 %v660, %v898
        %vm900 = vcmp.eq.f32.partialorder %v660, inf
        %v901 = vsel %vm900, %v660, %v899
        %vm902 = vcmp.eq.f32.partialorder %v660, 0.0
        %v903 = vand.u32 %v660, 2147483648
        %v904 = vsel %vm902, %v903, %v901
        %v905 = vrsqrt.pop %v661
        %v906 = vmul.f32 %v661, %v905
        %vm907 = vcmp.eq.f32.partialorder %v661, inf
        %v908 = vsel %vm907, %v661, %v906
        %vm909 = vcmp.eq.f32.partialorder %v661, 0.0
        %v910 = vand.u32 %v661, 2147483648
        %v911 = vsel %vm909, %v910, %v908
        %v912 = vrsqrt.pop %v662
        %v913 = vmul.f32 %v662, %v912
        %vm914 = vcmp.eq.f32.partialorder %v662, inf
        %v915 = vsel %vm914, %v662, %v913
        %vm916 = vcmp.eq.f32.partialorder %v662, 0.0
        %v917 = vand.u32 %v662, 2147483648
        %v918 = vsel %vm916, %v917, %v915
        %v919 = vrsqrt.pop %v663
        %v920 = vmul.f32 %v663, %v919
        %vm921 = vcmp.eq.f32.partialorder %v663, inf
        %v922 = vsel %vm921, %v663, %v920
        %vm923 = vcmp.eq.f32.partialorder %v663, 0.0
        %v924 = vand.u32 %v663, 2147483648
        %v925 = vsel %vm923, %v924, %v922
        %v926 = vrsqrt.pop %v664
        %v927 = vmul.f32 %v664, %v926
        %vm928 = vcmp.eq.f32.partialorder %v664, inf
        %v929 = vsel %vm928, %v664, %v927
        %vm930 = vcmp.eq.f32.partialorder %v664, 0.0
        %v931 = vand.u32 %v664, 2147483648
        %v932 = vsel %vm930, %v931, %v929
        %v933 = vrsqrt.pop %v665
        %v934 = vmul.f32 %v665, %v933
        %vm935 = vcmp.eq.f32.partialorder %v665, inf
        %v936 = vsel %vm935, %v665, %v934
        %vm937 = vcmp.eq.f32.partialorder %v665, 0.0
        %v938 = vand.u32 %v665, 2147483648
        %v939 = vsel %vm937, %v938, %v936
        %v940 = vrsqrt.pop %v666
        %v941 = vmul.f32 %v666, %v940
        %vm942 = vcmp.eq.f32.partialorder %v666, inf
        %v943 = vsel %vm942, %v666, %v941
        %vm944 = vcmp.eq.f32.partialorder %v666, 0.0
        %v945 = vand.u32 %v666, 2147483648
        %v946 = vsel %vm944, %v945, %v943
        %v947 = vrsqrt.pop %v667
        %v948 = vmul.f32 %v667, %v947
        %vm949 = vcmp.eq.f32.partialorder %v667, inf
        %v950 = vsel %vm949, %v667, %v948
        %vm951 = vcmp.eq.f32.partialorder %v667, 0.0
        %v952 = vand.u32 %v667, 2147483648
        %v953 = vsel %vm951, %v952, %v950
        %v954 = vrsqrt.pop %v668
        %v955 = vmul.f32 %v668, %v954
        %vm956 = vcmp.eq.f32.partialorder %v668, inf
        %v957 = vsel %vm956, %v668, %v955
        %vm958 = vcmp.eq.f32.partialorder %v668, 0.0
        %v959 = vand.u32 %v668, 2147483648
        %v960 = vsel %vm958, %v959, %v957
        %v961 = vrsqrt.pop %v669
        %v962 = vmul.f32 %v669, %v961
        %vm963 = vcmp.eq.f32.partialorder %v669, inf
        %v964 = vsel %vm963, %v669, %v962
        %vm965 = vcmp.eq.f32.partialorder %v669, 0.0
        %v966 = vand.u32 %v669, 2147483648
        %v967 = vsel %vm965, %v966, %v964
        %v968 = vrsqrt.pop %v670
        %v969 = vmul.f32 %v670, %v968
        %vm970 = vcmp.eq.f32.partialorder %v670, inf
        %v971 = vsel %vm970, %v670, %v969
        %vm972 = vcmp.eq.f32.partialorder %v670, 0.0
        %v973 = vand.u32 %v670, 2147483648
        %v974 = vsel %vm972, %v973, %v971
        %v975 = vrsqrt.pop %v671
        %v976 = vmul.f32 %v671, %v975
        %vm977 = vcmp.eq.f32.partialorder %v671, inf
        %v978 = vsel %vm977, %v671, %v976
        %vm979 = vcmp.eq.f32.partialorder %v671, 0.0
        %v980 = vand.u32 %v671, 2147483648
        %v981 = vsel %vm979, %v980, %v978
        %v982 = vrsqrt.pop %v672
        %v983 = vmul.f32 %v672, %v982
        %vm984 = vcmp.eq.f32.partialorder %v672, inf
        %v985 = vsel %vm984, %v672, %v983
        %vm986 = vcmp.eq.f32.partialorder %v672, 0.0
        %v987 = vand.u32 %v672, 2147483648
        %v988 = vsel %vm986, %v987, %v985
        %v989 = vrsqrt.pop %v673
        %v990 = vmul.f32 %v673, %v989
        %vm991 = vcmp.eq.f32.partialorder %v673, inf
        %v992 = vsel %vm991, %v673, %v990
        %vm993 = vcmp.eq.f32.partialorder %v673, 0.0
        %v994 = vand.u32 %v673, 2147483648
        %v995 = vsel %vm993, %v994, %v992
        %v996 = vrsqrt.pop %v674
        %v997 = vmul.f32 %v674, %v996
        %vm998 = vcmp.eq.f32.partialorder %v674, inf
        %v999 = vsel %vm998, %v674, %v997
        %vm1000 = vcmp.eq.f32.partialorder %v674, 0.0
        %v1001 = vand.u32 %v674, 2147483648
        %v1002 = vsel %vm1000, %v1001, %v999
        %v1003 = vrsqrt.pop %v675
        %v1004 = vmul.f32 %v675, %v1003
        %vm1005 = vcmp.eq.f32.partialorder %v675, inf
        %v1006 = vsel %vm1005, %v675, %v1004
        %vm1007 = vcmp.eq.f32.partialorder %v675, 0.0
        %v1008 = vand.u32 %v675, 2147483648
        %v1009 = vsel %vm1007, %v1008, %v1006
        %v1010 = vrsqrt.pop %v676
        %v1011 = vmul.f32 %v676, %v1010
        %vm1012 = vcmp.eq.f32.partialorder %v676, inf
        %v1013 = vsel %vm1012, %v676, %v1011
        %vm1014 = vcmp.eq.f32.partialorder %v676, 0.0
        %v1015 = vand.u32 %v676, 2147483648
        %v1016 = vsel %vm1014, %v1015, %v1013
        %v1017 = vrsqrt.pop %v677
        %v1018 = vmul.f32 %v677, %v1017
        %vm1019 = vcmp.eq.f32.partialorder %v677, inf
        %v1020 = vsel %vm1019, %v677, %v1018
        %vm1021 = vcmp.eq.f32.partialorder %v677, 0.0
        %v1022 = vand.u32 %v677, 2147483648
        %v1023 = vsel %vm1021, %v1022, %v1020
        %v1024 = vrsqrt.pop %v678
        %v1025 = vmul.f32 %v678, %v1024
        %vm1026 = vcmp.eq.f32.partialorder %v678, inf
        %v1027 = vsel %vm1026, %v678, %v1025
        %vm1028 = vcmp.eq.f32.partialorder %v678, 0.0
        %v1029 = vand.u32 %v678, 2147483648
        %v1030 = vsel %vm1028, %v1029, %v1027
        %v1031 = vrsqrt.pop %v679
        %v1032 = vmul.f32 %v679, %v1031
        %vm1033 = vcmp.eq.f32.partialorder %v679, inf
        %v1034 = vsel %vm1033, %v679, %v1032
        %vm1035 = vcmp.eq.f32.partialorder %v679, 0.0
        %v1036 = vand.u32 %v679, 2147483648
        %v1037 = vsel %vm1035, %v1036, %v1034
        %v1038 = vrsqrt.pop %v680
        %v1039 = vmul.f32 %v680, %v1038
        %vm1040 = vcmp.eq.f32.partialorder %v680, inf
        %v1041 = vsel %vm1040, %v680, %v1039
        %vm1042 = vcmp.eq.f32.partialorder %v680, 0.0
        %v1043 = vand.u32 %v680, 2147483648
        %v1044 = vsel %vm1042, %v1043, %v1041
        %v1045 = vrsqrt.pop %v681
        %v1046 = vmul.f32 %v681, %v1045
        %vm1047 = vcmp.eq.f32.partialorder %v681, inf
        %v1048 = vsel %vm1047, %v681, %v1046
        %vm1049 = vcmp.eq.f32.partialorder %v681, 0.0
        %v1050 = vand.u32 %v681, 2147483648
        %v1051 = vsel %vm1049, %v1050, %v1048
        %v1052 = vrsqrt.pop %v682
        %v1053 = vmul.f32 %v682, %v1052
        %vm1054 = vcmp.eq.f32.partialorder %v682, inf
        %v1055 = vsel %vm1054, %v682, %v1053
        %vm1056 = vcmp.eq.f32.partialorder %v682, 0.0
        %v1057 = vand.u32 %v682, 2147483648
        %v1058 = vsel %vm1056, %v1057, %v1055
        %v1059 = vrsqrt.pop %v683
        %v1060 = vmul.f32 %v683, %v1059
        %vm1061 = vcmp.eq.f32.partialorder %v683, inf
        %v1062 = vsel %vm1061, %v683, %v1060
        %vm1063 = vcmp.eq.f32.partialorder %v683, 0.0
        %v1064 = vand.u32 %v683, 2147483648
        %v1065 = vsel %vm1063, %v1064, %v1062
        %v1066 = vrsqrt.pop %v684
        %v1067 = vmul.f32 %v684, %v1066
        %vm1068 = vcmp.eq.f32.partialorder %v684, inf
        %v1069 = vsel %vm1068, %v684, %v1067
        %vm1070 = vcmp.eq.f32.partialorder %v684, 0.0
        %v1071 = vand.u32 %v684, 2147483648
        %v1072 = vsel %vm1070, %v1071, %v1069
        %v1073 = vrsqrt.pop %v685
        %v1074 = vmul.f32 %v685, %v1073
        %vm1075 = vcmp.eq.f32.partialorder %v685, inf
        %v1076 = vsel %vm1075, %v685, %v1074
        %vm1077 = vcmp.eq.f32.partialorder %v685, 0.0
        %v1078 = vand.u32 %v685, 2147483648
        %v1079 = vsel %vm1077, %v1078, %v1076
        %v1080 = vrsqrt.pop %v686
        %v1081 = vmul.f32 %v686, %v1080
        %vm1082 = vcmp.eq.f32.partialorder %v686, inf
        %v1083 = vsel %vm1082, %v686, %v1081
        %vm1084 = vcmp.eq.f32.partialorder %v686, 0.0
        %v1085 = vand.u32 %v686, 2147483648
        %v1086 = vsel %vm1084, %v1085, %v1083
        %v1087 = vrsqrt.pop %v687
        %v1088 = vmul.f32 %v687, %v1087
        %vm1089 = vcmp.eq.f32.partialorder %v687, inf
        %v1090 = vsel %vm1089, %v687, %v1088
        %vm1091 = vcmp.eq.f32.partialorder %v687, 0.0
        %v1092 = vand.u32 %v687, 2147483648
        %v1093 = vsel %vm1091, %v1092, %v1090
        %v1094 = vrsqrt.pop %v688
        %v1095 = vmul.f32 %v688, %v1094
        %vm1096 = vcmp.eq.f32.partialorder %v688, inf
        %v1097 = vsel %vm1096, %v688, %v1095
        %vm1098 = vcmp.eq.f32.partialorder %v688, 0.0
        %v1099 = vand.u32 %v688, 2147483648
        %v1100 = vsel %vm1098, %v1099, %v1097
        %v1101 = vrsqrt.pop %v689
        %v1102 = vmul.f32 %v689, %v1101
        %vm1103 = vcmp.eq.f32.partialorder %v689, inf
        %v1104 = vsel %vm1103, %v689, %v1102
        %vm1105 = vcmp.eq.f32.partialorder %v689, 0.0
        %v1106 = vand.u32 %v689, 2147483648
        %v1107 = vsel %vm1105, %v1106, %v1104
        %v1108 = vrsqrt.pop %v690
        %v1109 = vmul.f32 %v690, %v1108
        %vm1110 = vcmp.eq.f32.partialorder %v690, inf
        %v1111 = vsel %vm1110, %v690, %v1109
        %vm1112 = vcmp.eq.f32.partialorder %v690, 0.0
        %v1113 = vand.u32 %v690, 2147483648
        %v1114 = vsel %vm1112, %v1113, %v1111
        %v1115 = vrsqrt.pop %v691
        %v1116 = vmul.f32 %v691, %v1115
        %vm1117 = vcmp.eq.f32.partialorder %v691, inf
        %v1118 = vsel %vm1117, %v691, %v1116
        %vm1119 = vcmp.eq.f32.partialorder %v691, 0.0
        %v1120 = vand.u32 %v691, 2147483648
        %v1121 = vsel %vm1119, %v1120, %v1118
        %v1122 = vrsqrt.pop %v692
        %v1123 = vmul.f32 %v692, %v1122
        %vm1124 = vcmp.eq.f32.partialorder %v692, inf
        %v1125 = vsel %vm1124, %v692, %v1123
        %vm1126 = vcmp.eq.f32.partialorder %v692, 0.0
        %v1127 = vand.u32 %v692, 2147483648
        %v1128 = vsel %vm1126, %v1127, %v1125
        %v1129 = vrsqrt.pop %v693
        %v1130 = vmul.f32 %v693, %v1129
        %vm1131 = vcmp.eq.f32.partialorder %v693, inf
        %v1132 = vsel %vm1131, %v693, %v1130
        %vm1133 = vcmp.eq.f32.partialorder %v693, 0.0
        %v1134 = vand.u32 %v693, 2147483648
        %v1135 = vsel %vm1133, %v1134, %v1132
        %v1136 = vrsqrt.pop %v694
        %v1137 = vmul.f32 %v694, %v1136
        %vm1138 = vcmp.eq.f32.partialorder %v694, inf
        %v1139 = vsel %vm1138, %v694, %v1137
        %vm1140 = vcmp.eq.f32.partialorder %v694, 0.0
        %v1141 = vand.u32 %v694, 2147483648
        %v1142 = vsel %vm1140, %v1141, %v1139
        %v1143 = vsub.f32 1.0, %v701
        %v1144 = vsub.f32 1.0, %v708
        %v1145 = vsub.f32 1.0, %v715
        %v1146 = vsub.f32 1.0, %v722
        %v1147 = vsub.f32 1.0, %v729
        %v1148 = vsub.f32 1.0, %v736
        %v1149 = vsub.f32 1.0, %v743
        %v1150 = vsub.f32 1.0, %v750
        %v1151 = vsub.f32 1.0, %v757
        %v1152 = vsub.f32 1.0, %v764
        %v1153 = vsub.f32 1.0, %v771
        %v1154 = vsub.f32 1.0, %v778
        %v1155 = vsub.f32 1.0, %v785
        %v1156 = vsub.f32 1.0, %v792
        %v1157 = vsub.f32 1.0, %v799
        %v1158 = vsub.f32 1.0, %v806
        %v1159 = vsub.f32 1.0, %v813
        %v1160 = vsub.f32 1.0, %v820
        %v1161 = vsub.f32 1.0, %v827
        %v1162 = vsub.f32 1.0, %v834
        %v1163 = vsub.f32 1.0, %v841
        %v1164 = vsub.f32 1.0, %v848
        %v1165 = vsub.f32 1.0, %v855
        %v1166 = vsub.f32 1.0, %v862
        %v1167 = vsub.f32 1.0, %v869
        %v1168 = vsub.f32 1.0, %v876
        %v1169 = vsub.f32 1.0, %v883
        %v1170 = vsub.f32 1.0, %v890
        %v1171 = vsub.f32 1.0, %v897
        %v1172 = vsub.f32 1.0, %v904
        %v1173 = vsub.f32 1.0, %v911
        %v1174 = vsub.f32 1.0, %v918
        %v1175 = vsub.f32 1.0, %v925
        %v1176 = vsub.f32 1.0, %v932
        %v1177 = vsub.f32 1.0, %v939
        %v1178 = vsub.f32 1.0, %v946
        %v1179 = vsub.f32 1.0, %v953
        %v1180 = vsub.f32 1.0, %v960
        %v1181 = vsub.f32 1.0, %v967
        %v1182 = vsub.f32 1.0, %v974
        %v1183 = vsub.f32 1.0, %v981
        %v1184 = vsub.f32 1.0, %v988
        %v1185 = vsub.f32 1.0, %v995
        %v1186 = vsub.f32 1.0, %v1002
        %v1187 = vsub.f32 1.0, %v1009
        %v1188 = vsub.f32 1.0, %v1016
        %v1189 = vsub.f32 1.0, %v1023
        %v1190 = vsub.f32 1.0, %v1030
        %v1191 = vsub.f32 1.0, %v1037
        %v1192 = vsub.f32 1.0, %v1044
        %v1193 = vsub.f32 1.0, %v1051
        %v1194 = vsub.f32 1.0, %v1058
        %v1195 = vsub.f32 1.0, %v1065
        %v1196 = vsub.f32 1.0, %v1072
        %v1197 = vsub.f32 1.0, %v1079
        %v1198 = vsub.f32 1.0, %v1086
        %v1199 = vsub.f32 1.0, %v1093
        %v1200 = vsub.f32 1.0, %v1100
        %v1201 = vsub.f32 1.0, %v1107
        %v1202 = vsub.f32 1.0, %v1114
        %v1203 = vsub.f32 1.0, %v1121
        %v1204 = vsub.f32 1.0, %v1128
        %v1205 = vsub.f32 1.0, %v1135
        %v1206 = vsub.f32 1.0, %v1142
        %v1207 = vmul.f32 %v1143, %v1143
        %v1208 = vmul.f32 %v1144, %v1144
        %v1209 = vmul.f32 %v1145, %v1145
        %v1210 = vmul.f32 %v1146, %v1146
        %v1211 = vmul.f32 %v1147, %v1147
        %v1212 = vmul.f32 %v1148, %v1148
        %v1213 = vmul.f32 %v1149, %v1149
        %v1214 = vmul.f32 %v1150, %v1150
        %v1215 = vmul.f32 %v1151, %v1151
        %v1216 = vmul.f32 %v1152, %v1152
        %v1217 = vmul.f32 %v1153, %v1153
        %v1218 = vmul.f32 %v1154, %v1154
        %v1219 = vmul.f32 %v1155, %v1155
        %v1220 = vmul.f32 %v1156, %v1156
        %v1221 = vmul.f32 %v1157, %v1157
        %v1222 = vmul.f32 %v1158, %v1158
        %v1223 = vmul.f32 %v1159, %v1159
        %v1224 = vmul.f32 %v1160, %v1160
        %v1225 = vmul.f32 %v1161, %v1161
        %v1226 = vmul.f32 %v1162, %v1162
        %v1227 = vmul.f32 %v1163, %v1163
        %v1228 = vmul.f32 %v1164, %v1164
        %v1229 = vmul.f32 %v1165, %v1165
        %v1230 = vmul.f32 %v1166, %v1166
        %v1231 = vmul.f32 %v1167, %v1167
        %v1232 = vmul.f32 %v1168, %v1168
        %v1233 = vmul.f32 %v1169, %v1169
        %v1234 = vmul.f32 %v1170, %v1170
        %v1235 = vmul.f32 %v1171, %v1171
        %v1236 = vmul.f32 %v1172, %v1172
        %v1237 = vmul.f32 %v1173, %v1173
        %v1238 = vmul.f32 %v1174, %v1174
        %v1239 = vmul.f32 %v1175, %v1175
        %v1240 = vmul.f32 %v1176, %v1176
        %v1241 = vmul.f32 %v1177, %v1177
        %v1242 = vmul.f32 %v1178, %v1178
        %v1243 = vmul.f32 %v1179, %v1179
        %v1244 = vmul.f32 %v1180, %v1180
        %v1245 = vmul.f32 %v1181, %v1181
        %v1246 = vmul.f32 %v1182, %v1182
        %v1247 = vmul.f32 %v1183, %v1183
        %v1248 = vmul.f32 %v1184, %v1184
        %v1249 = vmul.f32 %v1185, %v1185
        %v1250 = vmul.f32 %v1186, %v1186
        %v1251 = vmul.f32 %v1187, %v1187
        %v1252 = vmul.f32 %v1188, %v1188
        %v1253 = vmul.f32 %v1189, %v1189
        %v1254 = vmul.f32 %v1190, %v1190
        %v1255 = vmul.f32 %v1191, %v1191
        %v1256 = vmul.f32 %v1192, %v1192
        %v1257 = vmul.f32 %v1193, %v1193
        %v1258 = vmul.f32 %v1194, %v1194
        %v1259 = vmul.f32 %v1195, %v1195
        %v1260 = vmul.f32 %v1196, %v1196
        %v1261 = vmul.f32 %v1197, %v1197
        %v1262 = vmul.f32 %v1198, %v1198
        %v1263 = vmul.f32 %v1199, %v1199
        %v1264 = vmul.f32 %v1200, %v1200
        %v1265 = vmul.f32 %v1201, %v1201
        %v1266 = vmul.f32 %v1202, %v1202
        %v1267 = vmul.f32 %v1203, %v1203
        %v1268 = vmul.f32 %v1204, %v1204
        %v1269 = vmul.f32 %v1205, %v1205
        %v1270 = vmul.f32 %v1206, %v1206
        %v1271 = vmul.f32 %v1207, %v1207
        %v1272 = vmul.f32 %v1208, %v1208
        %v1273 = vmul.f32 %v1209, %v1209
        %v1274 = vmul.f32 %v1210, %v1210
        %v1275 = vmul.f32 %v1211, %v1211
        %v1276 = vmul.f32 %v1212, %v1212
        %v1277 = vmul.f32 %v1213, %v1213
        %v1278 = vmul.f32 %v1214, %v1214
        %v1279 = vmul.f32 %v1215, %v1215
        %v1280 = vmul.f32 %v1216, %v1216
        %v1281 = vmul.f32 %v1217, %v1217
        %v1282 = vmul.f32 %v1218, %v1218
        %v1283 = vmul.f32 %v1219, %v1219
        %v1284 = vmul.f32 %v1220, %v1220
        %v1285 = vmul.f32 %v1221, %v1221
        %v1286 = vmul.f32 %v1222, %v1222
        %v1287 = vmul.f32 %v1223, %v1223
        %v1288 = vmul.f32 %v1224, %v1224
        %v1289 = vmul.f32 %v1225, %v1225
        %v1290 = vmul.f32 %v1226, %v1226
        %v1291 = vmul.f32 %v1227, %v1227
        %v1292 = vmul.f32 %v1228, %v1228
        %v1293 = vmul.f32 %v1229, %v1229
        %v1294 = vmul.f32 %v1230, %v1230
        %v1295 = vmul.f32 %v1231, %v1231
        %v1296 = vmul.f32 %v1232, %v1232
        %v1297 = vmul.f32 %v1233, %v1233
        %v1298 = vmul.f32 %v1234, %v1234
        %v1299 = vmul.f32 %v1235, %v1235
        %v1300 = vmul.f32 %v1236, %v1236
        %v1301 = vmul.f32 %v1237, %v1237
        %v1302 = vmul.f32 %v1238, %v1238
        %v1303 = vmul.f32 %v1239, %v1239
        %v1304 = vmul.f32 %v1240, %v1240
        %v1305 = vmul.f32 %v1241, %v1241
        %v1306 = vmul.f32 %v1242, %v1242
        %v1307 = vmul.f32 %v1243, %v1243
        %v1308 = vmul.f32 %v1244, %v1244
        %v1309 = vmul.f32 %v1245, %v1245
        %v1310 = vmul.f32 %v1246, %v1246
        %v1311 = vmul.f32 %v1247, %v1247
        %v1312 = vmul.f32 %v1248, %v1248
        %v1313 = vmul.f32 %v1249, %v1249
        %v1314 = vmul.f32 %v1250, %v1250
        %v1315 = vmul.f32 %v1251, %v1251
        %v1316 = vmul.f32 %v1252, %v1252
        %v1317 = vmul.f32 %v1253, %v1253
        %v1318 = vmul.f32 %v1254, %v1254
        %v1319 = vmul.f32 %v1255, %v1255
        %v1320 = vmul.f32 %v1256, %v1256
        %v1321 = vmul.f32 %v1257, %v1257
        %v1322 = vmul.f32 %v1258, %v1258
        %v1323 = vmul.f32 %v1259, %v1259
        %v1324 = vmul.f32 %v1260, %v1260
        %v1325 = vmul.f32 %v1261, %v1261
        %v1326 = vmul.f32 %v1262, %v1262
        %v1327 = vmul.f32 %v1263, %v1263
        %v1328 = vmul.f32 %v1264, %v1264
        %v1329 = vmul.f32 %v1265, %v1265
        %v1330 = vmul.f32 %v1266, %v1266
        %v1331 = vmul.f32 %v1267, %v1267
        %v1332 = vmul.f32 %v1268, %v1268
        %v1333 = vmul.f32 %v1269, %v1269
        %v1334 = vmul.f32 %v1270, %v1270
        %v1335 = vmul.f32 %v1271, %v1207
        %v1336 = vmul.f32 %v1272, %v1208
        %v1337 = vmul.f32 %v1273, %v1209
        %v1338 = vmul.f32 %v1274, %v1210
        %v1339 = vmul.f32 %v1275, %v1211
        %v1340 = vmul.f32 %v1276, %v1212
        %v1341 = vmul.f32 %v1277, %v1213
        %v1342 = vmul.f32 %v1278, %v1214
        %v1343 = vmul.f32 %v1279, %v1215
        %v1344 = vmul.f32 %v1280, %v1216
        %v1345 = vmul.f32 %v1281, %v1217
        %v1346 = vmul.f32 %v1282, %v1218
        %v1347 = vmul.f32 %v1283, %v1219
        %v1348 = vmul.f32 %v1284, %v1220
        %v1349 = vmul.f32 %v1285, %v1221
        %v1350 = vmul.f32 %v1286, %v1222
        %v1351 = vmul.f32 %v1287, %v1223
        %v1352 = vmul.f32 %v1288, %v1224
        %v1353 = vmul.f32 %v1289, %v1225
        %v1354 = vmul.f32 %v1290, %v1226
        %v1355 = vmul.f32 %v1291, %v1227
        %v1356 = vmul.f32 %v1292, %v1228
        %v1357 = vmul.f32 %v1293, %v1229
        %v1358 = vmul.f32 %v1294, %v1230
        %v1359 = vmul.f32 %v1295, %v1231
        %v1360 = vmul.f32 %v1296, %v1232
        %v1361 = vmul.f32 %v1297, %v1233
        %v1362 = vmul.f32 %v1298, %v1234
        %v1363 = vmul.f32 %v1299, %v1235
        %v1364 = vmul.f32 %v1300, %v1236
        %v1365 = vmul.f32 %v1301, %v1237
        %v1366 = vmul.f32 %v1302, %v1238
        %v1367 = vmul.f32 %v1303, %v1239
        %v1368 = vmul.f32 %v1304, %v1240
        %v1369 = vmul.f32 %v1305, %v1241
        %v1370 = vmul.f32 %v1306, %v1242
        %v1371 = vmul.f32 %v1307, %v1243
        %v1372 = vmul.f32 %v1308, %v1244
        %v1373 = vmul.f32 %v1309, %v1245
        %v1374 = vmul.f32 %v1310, %v1246
        %v1375 = vmul.f32 %v1311, %v1247
        %v1376 = vmul.f32 %v1312, %v1248
        %v1377 = vmul.f32 %v1313, %v1249
        %v1378 = vmul.f32 %v1314, %v1250
        %v1379 = vmul.f32 %v1315, %v1251
        %v1380 = vmul.f32 %v1316, %v1252
        %v1381 = vmul.f32 %v1317, %v1253
        %v1382 = vmul.f32 %v1318, %v1254
        %v1383 = vmul.f32 %v1319, %v1255
        %v1384 = vmul.f32 %v1320, %v1256
        %v1385 = vmul.f32 %v1321, %v1257
        %v1386 = vmul.f32 %v1322, %v1258
        %v1387 = vmul.f32 %v1323, %v1259
        %v1388 = vmul.f32 %v1324, %v1260
        %v1389 = vmul.f32 %v1325, %v1261
        %v1390 = vmul.f32 %v1326, %v1262
        %v1391 = vmul.f32 %v1327, %v1263
        %v1392 = vmul.f32 %v1328, %v1264
        %v1393 = vmul.f32 %v1329, %v1265
        %v1394 = vmul.f32 %v1330, %v1266
        %v1395 = vmul.f32 %v1331, %v1267
        %v1396 = vmul.f32 %v1332, %v1268
        %v1397 = vmul.f32 %v1333, %v1269
        %v1398 = vmul.f32 %v1334, %v1270
        %v1399 = vmul.f32 %v631, 35.0
        %v1400 = vmul.f32 %v632, 35.0
        %v1401 = vmul.f32 %v633, 35.0
        %v1402 = vmul.f32 %v634, 35.0
        %v1403 = vmul.f32 %v635, 35.0
        %v1404 = vmul.f32 %v636, 35.0
        %v1405 = vmul.f32 %v637, 35.0
        %v1406 = vmul.f32 %v638, 35.0
        %v1407 = vmul.f32 %v639, 35.0
        %v1408 = vmul.f32 %v640, 35.0
        %v1409 = vmul.f32 %v641, 35.0
        %v1410 = vmul.f32 %v642, 35.0
        %v1411 = vmul.f32 %v643, 35.0
        %v1412 = vmul.f32 %v644, 35.0
        %v1413 = vmul.f32 %v645, 35.0
        %v1414 = vmul.f32 %v646, 35.0
        %v1415 = vmul.f32 %v647, 35.0
        %v1416 = vmul.f32 %v648, 35.0
        %v1417 = vmul.f32 %v649, 35.0
        %v1418 = vmul.f32 %v650, 35.0
        %v1419 = vmul.f32 %v651, 35.0
        %v1420 = vmul.f32 %v652, 35.0
        %v1421 = vmul.f32 %v653, 35.0
        %v1422 = vmul.f32 %v654, 35.0
        %v1423 = vmul.f32 %v655, 35.0
        %v1424 = vmul.f32 %v656, 35.0
        %v1425 = vmul.f32 %v657, 35.0
        %v1426 = vmul.f32 %v658, 35.0
        %v1427 = vmul.f32 %v659, 35.0
        %v1428 = vmul.f32 %v660, 35.0
        %v1429 = vmul.f32 %v661, 35.0
        %v1430 = vmul.f32 %v662, 35.0
        %v1431 = vmul.f32 %v663, 35.0
        %v1432 = vmul.f32 %v664, 35.0
        %v1433 = vmul.f32 %v665, 35.0
        %v1434 = vmul.f32 %v666, 35.0
        %v1435 = vmul.f32 %v667, 35.0
        %v1436 = vmul.f32 %v668, 35.0
        %v1437 = vmul.f32 %v669, 35.0
        %v1438 = vmul.f32 %v670, 35.0
        %v1439 = vmul.f32 %v671, 35.0
        %v1440 = vmul.f32 %v672, 35.0
        %v1441 = vmul.f32 %v673, 35.0
        %v1442 = vmul.f32 %v674, 35.0
        %v1443 = vmul.f32 %v675, 35.0
        %v1444 = vmul.f32 %v676, 35.0
        %v1445 = vmul.f32 %v677, 35.0
        %v1446 = vmul.f32 %v678, 35.0
        %v1447 = vmul.f32 %v679, 35.0
        %v1448 = vmul.f32 %v680, 35.0
        %v1449 = vmul.f32 %v681, 35.0
        %v1450 = vmul.f32 %v682, 35.0
        %v1451 = vmul.f32 %v683, 35.0
        %v1452 = vmul.f32 %v684, 35.0
        %v1453 = vmul.f32 %v685, 35.0
        %v1454 = vmul.f32 %v686, 35.0
        %v1455 = vmul.f32 %v687, 35.0
        %v1456 = vmul.f32 %v688, 35.0
        %v1457 = vmul.f32 %v689, 35.0
        %v1458 = vmul.f32 %v690, 35.0
        %v1459 = vmul.f32 %v691, 35.0
        %v1460 = vmul.f32 %v692, 35.0
        %v1461 = vmul.f32 %v693, 35.0
        %v1462 = vmul.f32 %v694, 35.0
        %v1463 = vmul.f32 %v701, 18.0
        %v1464 = vmul.f32 %v708, 18.0
        %v1465 = vmul.f32 %v715, 18.0
        %v1466 = vmul.f32 %v722, 18.0
        %v1467 = vmul.f32 %v729, 18.0
        %v1468 = vmul.f32 %v736, 18.0
        %v1469 = vmul.f32 %v743, 18.0
        %v1470 = vmul.f32 %v750, 18.0
        %v1471 = vmul.f32 %v757, 18.0
        %v1472 = vmul.f32 %v764, 18.0
        %v1473 = vmul.f32 %v771, 18.0
        %v1474 = vmul.f32 %v778, 18.0
        %v1475 = vmul.f32 %v785, 18.0
        %v1476 = vmul.f32 %v792, 18.0
        %v1477 = vmul.f32 %v799, 18.0
        %v1478 = vmul.f32 %v806, 18.0
        %v1479 = vmul.f32 %v813, 18.0
        %v1480 = vmul.f32 %v820, 18.0
        %v1481 = vmul.f32 %v827, 18.0
        %v1482 = vmul.f32 %v834, 18.0
        %v1483 = vmul.f32 %v841, 18.0
        %v1484 = vmul.f32 %v848, 18.0
        %v1485 = vmul.f32 %v855, 18.0
        %v1486 = vmul.f32 %v862, 18.0
        %v1487 = vmul.f32 %v869, 18.0
        %v1488 = vmul.f32 %v876, 18.0
        %v1489 = vmul.f32 %v883, 18.0
        %v1490 = vmul.f32 %v890, 18.0
        %v1491 = vmul.f32 %v897, 18.0
        %v1492 = vmul.f32 %v904, 18.0
        %v1493 = vmul.f32 %v911, 18.0
        %v1494 = vmul.f32 %v918, 18.0
        %v1495 = vmul.f32 %v925, 18.0
        %v1496 = vmul.f32 %v932, 18.0
        %v1497 = vmul.f32 %v939, 18.0
        %v1498 = vmul.f32 %v946, 18.0
        %v1499 = vmul.f32 %v953, 18.0
        %v1500 = vmul.f32 %v960, 18.0
        %v1501 = vmul.f32 %v967, 18.0
        %v1502 = vmul.f32 %v974, 18.0
        %v1503 = vmul.f32 %v981, 18.0
        %v1504 = vmul.f32 %v988, 18.0
        %v1505 = vmul.f32 %v995, 18.0
        %v1506 = vmul.f32 %v1002, 18.0
        %v1507 = vmul.f32 %v1009, 18.0
        %v1508 = vmul.f32 %v1016, 18.0
        %v1509 = vmul.f32 %v1023, 18.0
        %v1510 = vmul.f32 %v1030, 18.0
        %v1511 = vmul.f32 %v1037, 18.0
        %v1512 = vmul.f32 %v1044, 18.0
        %v1513 = vmul.f32 %v1051, 18.0
        %v1514 = vmul.f32 %v1058, 18.0
        %v1515 = vmul.f32 %v1065, 18.0
        %v1516 = vmul.f32 %v1072, 18.0
        %v1517 = vmul.f32 %v1079, 18.0
        %v1518 = vmul.f32 %v1086, 18.0
        %v1519 = vmul.f32 %v1093, 18.0
        %v1520 = vmul.f32 %v1100, 18.0
        %v1521 = vmul.f32 %v1107, 18.0
        %v1522 = vmul.f32 %v1114, 18.0
        %v1523 = vmul.f32 %v1121, 18.0
        %v1524 = vmul.f32 %v1128, 18.0
        %v1525 = vmul.f32 %v1135, 18.0
        %v1526 = vmul.f32 %v1142, 18.0
        %v1527 = vadd.f32 %v1399, %v1463
        %v1528 = vadd.f32 %v1400, %v1464
        %v1529 = vadd.f32 %v1401, %v1465
        %v1530 = vadd.f32 %v1402, %v1466
        %v1531 = vadd.f32 %v1403, %v1467
        %v1532 = vadd.f32 %v1404, %v1468
        %v1533 = vadd.f32 %v1405, %v1469
        %v1534 = vadd.f32 %v1406, %v1470
        %v1535 = vadd.f32 %v1407, %v1471
        %v1536 = vadd.f32 %v1408, %v1472
        %v1537 = vadd.f32 %v1409, %v1473
        %v1538 = vadd.f32 %v1410, %v1474
        %v1539 = vadd.f32 %v1411, %v1475
        %v1540 = vadd.f32 %v1412, %v1476
        %v1541 = vadd.f32 %v1413, %v1477
        %v1542 = vadd.f32 %v1414, %v1478
        %v1543 = vadd.f32 %v1415, %v1479
        %v1544 = vadd.f32 %v1416, %v1480
        %v1545 = vadd.f32 %v1417, %v1481
        %v1546 = vadd.f32 %v1418, %v1482
        %v1547 = vadd.f32 %v1419, %v1483
        %v1548 = vadd.f32 %v1420, %v1484
        %v1549 = vadd.f32 %v1421, %v1485
        %v1550 = vadd.f32 %v1422, %v1486
        %v1551 = vadd.f32 %v1423, %v1487
        %v1552 = vadd.f32 %v1424, %v1488
        %v1553 = vadd.f32 %v1425, %v1489
        %v1554 = vadd.f32 %v1426, %v1490
        %v1555 = vadd.f32 %v1427, %v1491
        %v1556 = vadd.f32 %v1428, %v1492
        %v1557 = vadd.f32 %v1429, %v1493
        %v1558 = vadd.f32 %v1430, %v1494
        %v1559 = vadd.f32 %v1431, %v1495
        %v1560 = vadd.f32 %v1432, %v1496
        %v1561 = vadd.f32 %v1433, %v1497
        %v1562 = vadd.f32 %v1434, %v1498
        %v1563 = vadd.f32 %v1435, %v1499
        %v1564 = vadd.f32 %v1436, %v1500
        %v1565 = vadd.f32 %v1437, %v1501
        %v1566 = vadd.f32 %v1438, %v1502
        %v1567 = vadd.f32 %v1439, %v1503
        %v1568 = vadd.f32 %v1440, %v1504
        %v1569 = vadd.f32 %v1441, %v1505
        %v1570 = vadd.f32 %v1442, %v1506
        %v1571 = vadd.f32 %v1443, %v1507
        %v1572 = vadd.f32 %v1444, %v1508
        %v1573 = vadd.f32 %v1445, %v1509
        %v1574 = vadd.f32 %v1446, %v1510
        %v1575 = vadd.f32 %v1447, %v1511
        %v1576 = vadd.f32 %v1448, %v1512
        %v1577 = vadd.f32 %v1449, %v1513
        %v1578 = vadd.f32 %v1450, %v1514
        %v1579 = vadd.f32 %v1451, %v1515
        %v1580 = vadd.f32 %v1452, %v1516
        %v1581 = vadd.f32 %v1453, %v1517
        %v1582 = vadd.f32 %v1454, %v1518
        %v1583 = vadd.f32 %v1455, %v1519
        %v1584 = vadd.f32 %v1456, %v1520
        %v1585 = vadd.f32 %v1457, %v1521
        %v1586 = vadd.f32 %v1458, %v1522
        %v1587 = vadd.f32 %v1459, %v1523
        %v1588 = vadd.f32 %v1460, %v1524
        %v1589 = vadd.f32 %v1461, %v1525
        %v1590 = vadd.f32 %v1462, %v1526
        %v1591 = vadd.f32 %v1527, 3.0
        %v1592 = vadd.f32 %v1528, 3.0
        %v1593 = vadd.f32 %v1529, 3.0
        %v1594 = vadd.f32 %v1530, 3.0
        %v1595 = vadd.f32 %v1531, 3.0
        %v1596 = vadd.f32 %v1532, 3.0
        %v1597 = vadd.f32 %v1533, 3.0
        %v1598 = vadd.f32 %v1534, 3.0
        %v1599 = vadd.f32 %v1535, 3.0
        %v1600 = vadd.f32 %v1536, 3.0
        %v1601 = vadd.f32 %v1537, 3.0
        %v1602 = vadd.f32 %v1538, 3.0
        %v1603 = vadd.f32 %v1539, 3.0
        %v1604 = vadd.f32 %v1540, 3.0
        %v1605 = vadd.f32 %v1541, 3.0
        %v1606 = vadd.f32 %v1542, 3.0
        %v1607 = vadd.f32 %v1543, 3.0
        %v1608 = vadd.f32 %v1544, 3.0
        %v1609 = vadd.f32 %v1545, 3.0
        %v1610 = vadd.f32 %v1546, 3.0
        %v1611 = vadd.f32 %v1547, 3.0
        %v1612 = vadd.f32 %v1548, 3.0
        %v1613 = vadd.f32 %v1549, 3.0
        %v1614 = vadd.f32 %v1550, 3.0
        %v1615 = vadd.f32 %v1551, 3.0
        %v1616 = vadd.f32 %v1552, 3.0
        %v1617 = vadd.f32 %v1553, 3.0
        %v1618 = vadd.f32 %v1554, 3.0
        %v1619 = vadd.f32 %v1555, 3.0
        %v1620 = vadd.f32 %v1556, 3.0
        %v1621 = vadd.f32 %v1557, 3.0
        %v1622 = vadd.f32 %v1558, 3.0
        %v1623 = vadd.f32 %v1559, 3.0
        %v1624 = vadd.f32 %v1560, 3.0
        %v1625 = vadd.f32 %v1561, 3.0
        %v1626 = vadd.f32 %v1562, 3.0
        %v1627 = vadd.f32 %v1563, 3.0
        %v1628 = vadd.f32 %v1564, 3.0
        %v1629 = vadd.f32 %v1565, 3.0
        %v1630 = vadd.f32 %v1566, 3.0
        %v1631 = vadd.f32 %v1567, 3.0
        %v1632 = vadd.f32 %v1568, 3.0
        %v1633 = vadd.f32 %v1569, 3.0
        %v1634 = vadd.f32 %v1570, 3.0
        %v1635 = vadd.f32 %v1571, 3.0
        %v1636 = vadd.f32 %v1572, 3.0
        %v1637 = vadd.f32 %v1573, 3.0
        %v1638 = vadd.f32 %v1574, 3.0
        %v1639 = vadd.f32 %v1575, 3.0
        %v1640 = vadd.f32 %v1576, 3.0
        %v1641 = vadd.f32 %v1577, 3.0
        %v1642 = vadd.f32 %v1578, 3.0
        %v1643 = vadd.f32 %v1579, 3.0
        %v1644 = vadd.f32 %v1580, 3.0
        %v1645 = vadd.f32 %v1581, 3.0
        %v1646 = vadd.f32 %v1582, 3.0
        %v1647 = vadd.f32 %v1583, 3.0
        %v1648 = vadd.f32 %v1584, 3.0
        %v1649 = vadd.f32 %v1585, 3.0
        %v1650 = vadd.f32 %v1586, 3.0
        %v1651 = vadd.f32 %v1587, 3.0
        %v1652 = vadd.f32 %v1588, 3.0
        %v1653 = vadd.f32 %v1589, 3.0
        %v1654 = vadd.f32 %v1590, 3.0
        %v1655 = vmul.f32 %v1335, %v1591
        %v1656 = vmul.f32 %v1336, %v1592
        %v1657 = vmul.f32 %v1337, %v1593
        %v1658 = vmul.f32 %v1338, %v1594
        %v1659 = vmul.f32 %v1339, %v1595
        %v1660 = vmul.f32 %v1340, %v1596
        %v1661 = vmul.f32 %v1341, %v1597
        %v1662 = vmul.f32 %v1342, %v1598
        %v1663 = vmul.f32 %v1343, %v1599
        %v1664 = vmul.f32 %v1344, %v1600
        %v1665 = vmul.f32 %v1345, %v1601
        %v1666 = vmul.f32 %v1346, %v1602
        %v1667 = vmul.f32 %v1347, %v1603
        %v1668 = vmul.f32 %v1348, %v1604
        %v1669 = vmul.f32 %v1349, %v1605
        %v1670 = vmul.f32 %v1350, %v1606
        %v1671 = vmul.f32 %v1351, %v1607
        %v1672 = vmul.f32 %v1352, %v1608
        %v1673 = vmul.f32 %v1353, %v1609
        %v1674 = vmul.f32 %v1354, %v1610
        %v1675 = vmul.f32 %v1355, %v1611
        %v1676 = vmul.f32 %v1356, %v1612
        %v1677 = vmul.f32 %v1357, %v1613
        %v1678 = vmul.f32 %v1358, %v1614
        %v1679 = vmul.f32 %v1359, %v1615
        %v1680 = vmul.f32 %v1360, %v1616
        %v1681 = vmul.f32 %v1361, %v1617
        %v1682 = vmul.f32 %v1362, %v1618
        %v1683 = vmul.f32 %v1363, %v1619
        %v1684 = vmul.f32 %v1364, %v1620
        %v1685 = vmul.f32 %v1365, %v1621
        %v1686 = vmul.f32 %v1366, %v1622
        %v1687 = vmul.f32 %v1367, %v1623
        %v1688 = vmul.f32 %v1368, %v1624
        %v1689 = vmul.f32 %v1369, %v1625
        %v1690 = vmul.f32 %v1370, %v1626
        %v1691 = vmul.f32 %v1371, %v1627
        %v1692 = vmul.f32 %v1372, %v1628
        %v1693 = vmul.f32 %v1373, %v1629
        %v1694 = vmul.f32 %v1374, %v1630
        %v1695 = vmul.f32 %v1375, %v1631
        %v1696 = vmul.f32 %v1376, %v1632
        %v1697 = vmul.f32 %v1377, %v1633
        %v1698 = vmul.f32 %v1378, %v1634
        %v1699 = vmul.f32 %v1379, %v1635
        %v1700 = vmul.f32 %v1380, %v1636
        %v1701 = vmul.f32 %v1381, %v1637
        %v1702 = vmul.f32 %v1382, %v1638
        %v1703 = vmul.f32 %v1383, %v1639
        %v1704 = vmul.f32 %v1384, %v1640
        %v1705 = vmul.f32 %v1385, %v1641
        %v1706 = vmul.f32 %v1386, %v1642
        %v1707 = vmul.f32 %v1387, %v1643
        %v1708 = vmul.f32 %v1388, %v1644
        %v1709 = vmul.f32 %v1389, %v1645
        %v1710 = vmul.f32 %v1390, %v1646
        %v1711 = vmul.f32 %v1391, %v1647
        %v1712 = vmul.f32 %v1392, %v1648
        %v1713 = vmul.f32 %v1393, %v1649
        %v1714 = vmul.f32 %v1394, %v1650
        %v1715 = vmul.f32 %v1395, %v1651
        %v1716 = vmul.f32 %v1396, %v1652
        %v1717 = vmul.f32 %v1397, %v1653
        %v1718 = vmul.f32 %v1398, %v1654
        %v1719 = vld [vmem:[%s224] sm:$0x3]
        %v1721 = vlaneseq
        %v1722 = vshrl.u32 %v1721, 7
        %v1723 = vsub.s32 0, %v1722
        %v1724 = vrot.slane %v1719, %v1723
        %v1725 = vlaneseq
        %v1726 = vshrl.u32 %v1725, 7
        %v1727 = vsub.s32 1, %v1726
        %v1728 = vrot.slane %v1719, %v1727
        %v1731 = vmul.f32 %v1655, %v1724
        %v1732 = vmul.f32 %v1656, %v1728
        %v1733 = vmul.f32 %v1657, %v1724
        %v1734 = vmul.f32 %v1658, %v1728
        %v1735 = vmul.f32 %v1659, %v1724
        %v1736 = vmul.f32 %v1660, %v1728
        %v1737 = vmul.f32 %v1661, %v1724
        %v1738 = vmul.f32 %v1662, %v1728
        %v1739 = vmul.f32 %v1663, %v1724
        %v1740 = vmul.f32 %v1664, %v1728
        %v1741 = vmul.f32 %v1665, %v1724
        %v1742 = vmul.f32 %v1666, %v1728
        %v1743 = vmul.f32 %v1667, %v1724
        %v1744 = vmul.f32 %v1668, %v1728
        %v1745 = vmul.f32 %v1669, %v1724
        %v1746 = vmul.f32 %v1670, %v1728
        %v1747 = vmul.f32 %v1671, %v1724
        %v1748 = vmul.f32 %v1672, %v1728
        %v1749 = vmul.f32 %v1673, %v1724
        %v1750 = vmul.f32 %v1674, %v1728
        %v1751 = vmul.f32 %v1675, %v1724
        %v1752 = vmul.f32 %v1676, %v1728
        %v1753 = vmul.f32 %v1677, %v1724
        %v1754 = vmul.f32 %v1678, %v1728
        %v1755 = vmul.f32 %v1679, %v1724
        %v1756 = vmul.f32 %v1680, %v1728
        %v1757 = vmul.f32 %v1681, %v1724
        %v1758 = vmul.f32 %v1682, %v1728
        %v1759 = vmul.f32 %v1683, %v1724
        %v1760 = vmul.f32 %v1684, %v1728
        %v1761 = vmul.f32 %v1685, %v1724
        %v1762 = vmul.f32 %v1686, %v1728
        %v1763 = vmul.f32 %v1687, %v1724
        %v1764 = vmul.f32 %v1688, %v1728
        %v1765 = vmul.f32 %v1689, %v1724
        %v1766 = vmul.f32 %v1690, %v1728
        %v1767 = vmul.f32 %v1691, %v1724
        %v1768 = vmul.f32 %v1692, %v1728
        %v1769 = vmul.f32 %v1693, %v1724
        %v1770 = vmul.f32 %v1694, %v1728
        %v1771 = vmul.f32 %v1695, %v1724
        %v1772 = vmul.f32 %v1696, %v1728
        %v1773 = vmul.f32 %v1697, %v1724
        %v1774 = vmul.f32 %v1698, %v1728
        %v1775 = vmul.f32 %v1699, %v1724
        %v1776 = vmul.f32 %v1700, %v1728
        %v1777 = vmul.f32 %v1701, %v1724
        %v1778 = vmul.f32 %v1702, %v1728
        %v1779 = vmul.f32 %v1703, %v1724
        %v1780 = vmul.f32 %v1704, %v1728
        %v1781 = vmul.f32 %v1705, %v1724
        %v1782 = vmul.f32 %v1706, %v1728
        %v1783 = vmul.f32 %v1707, %v1724
        %v1784 = vmul.f32 %v1708, %v1728
        %v1785 = vmul.f32 %v1709, %v1724
        %v1786 = vmul.f32 %v1710, %v1728
        %v1787 = vmul.f32 %v1711, %v1724
        %v1788 = vmul.f32 %v1712, %v1728
        %v1789 = vmul.f32 %v1713, %v1724
        %v1790 = vmul.f32 %v1714, %v1728
        %v1791 = vmul.f32 %v1715, %v1724
        %v1792 = vmul.f32 %v1716, %v1728
        %v1793 = vmul.f32 %v1717, %v1724
        %v1794 = vmul.f32 %v1718, %v1728
        %1795 = vst [vmem:[%s208] sm:$0xff] %v1731
        %1796 = vst [vmem:[%s208 + $0x8] sm:$0xff] %v1732
        %1797 = vst [vmem:[%s208 + $0x10] sm:$0xff] %v1733
        %1798 = vst [vmem:[%s208 + $0x18] sm:$0xff] %v1734
        %1799 = vst [vmem:[%s208 + $0x20] sm:$0xff] %v1735
        %1800 = vst [vmem:[%s208 + $0x28] sm:$0xff] %v1736
        %1801 = vst [vmem:[%s208 + $0x30] sm:$0xff] %v1737
        %1802 = vst [vmem:[%s208 + $0x38] sm:$0xff] %v1738
        %1803 = vst [vmem:[%s208 + $0x40] sm:$0xff] %v1739
        %1804 = vst [vmem:[%s208 + $0x48] sm:$0xff] %v1740
        %1805 = vst [vmem:[%s208 + $0x50] sm:$0xff] %v1741
        %1806 = vst [vmem:[%s208 + $0x58] sm:$0xff] %v1742
        %1807 = vst [vmem:[%s208 + $0x60] sm:$0xff] %v1743
        %1808 = vst [vmem:[%s208 + $0x68] sm:$0xff] %v1744
        %1809 = vst [vmem:[%s208 + $0x70] sm:$0xff] %v1745
        %1810 = vst [vmem:[%s208 + $0x78] sm:$0xff] %v1746
        %1811 = vst [vmem:[%s208 + $0x80] sm:$0xff] %v1747
        %1812 = vst [vmem:[%s208 + $0x88] sm:$0xff] %v1748
        %1813 = vst [vmem:[%s208 + $0x90] sm:$0xff] %v1749
        %1814 = vst [vmem:[%s208 + $0x98] sm:$0xff] %v1750
        %1815 = vst [vmem:[%s208 + $0xa0] sm:$0xff] %v1751
        %1816 = vst [vmem:[%s208 + $0xa8] sm:$0xff] %v1752
        %1817 = vst [vmem:[%s208 + $0xb0] sm:$0xff] %v1753
        %1818 = vst [vmem:[%s208 + $0xb8] sm:$0xff] %v1754
        %1819 = vst [vmem:[%s208 + $0xc0] sm:$0xff] %v1755
        %1820 = vst [vmem:[%s208 + $0xc8] sm:$0xff] %v1756
        %1821 = vst [vmem:[%s208 + $0xd0] sm:$0xff] %v1757
        %1822 = vst [vmem:[%s208 + $0xd8] sm:$0xff] %v1758
        %1823 = vst [vmem:[%s208 + $0xe0] sm:$0xff] %v1759
        %1824 = vst [vmem:[%s208 + $0xe8] sm:$0xff] %v1760
        %1825 = vst [vmem:[%s208 + $0xf0] sm:$0xff] %v1761
        %1826 = vst [vmem:[%s208 + $0xf8] sm:$0xff] %v1762
        %1827 = vst [vmem:[%s208 + $0x100] sm:$0xff] %v1763
        %1828 = vst [vmem:[%s208 + $0x108] sm:$0xff] %v1764
        %1829 = vst [vmem:[%s208 + $0x110] sm:$0xff] %v1765
        %1830 = vst [vmem:[%s208 + $0x118] sm:$0xff] %v1766
        %1831 = vst [vmem:[%s208 + $0x120] sm:$0xff] %v1767
        %1832 = vst [vmem:[%s208 + $0x128] sm:$0xff] %v1768
        %1833 = vst [vmem:[%s208 + $0x130] sm:$0xff] %v1769
        %1834 = vst [vmem:[%s208 + $0x138] sm:$0xff] %v1770
        %1835 = vst [vmem:[%s208 + $0x140] sm:$0xff] %v1771
        %1836 = vst [vmem:[%s208 + $0x148] sm:$0xff] %v1772
        %1837 = vst [vmem:[%s208 + $0x150] sm:$0xff] %v1773
        %1838 = vst [vmem:[%s208 + $0x158] sm:$0xff] %v1774
        %1839 = vst [vmem:[%s208 + $0x160] sm:$0xff] %v1775
        %1840 = vst [vmem:[%s208 + $0x168] sm:$0xff] %v1776
        %1841 = vst [vmem:[%s208 + $0x170] sm:$0xff] %v1777
        %1842 = vst [vmem:[%s208 + $0x178] sm:$0xff] %v1778
        %1843 = vst [vmem:[%s208 + $0x180] sm:$0xff] %v1779
        %1844 = vst [vmem:[%s208 + $0x188] sm:$0xff] %v1780
        %1845 = vst [vmem:[%s208 + $0x190] sm:$0xff] %v1781
        %1846 = vst [vmem:[%s208 + $0x198] sm:$0xff] %v1782
        %1847 = vst [vmem:[%s208 + $0x1a0] sm:$0xff] %v1783
        %1848 = vst [vmem:[%s208 + $0x1a8] sm:$0xff] %v1784
        %1849 = vst [vmem:[%s208 + $0x1b0] sm:$0xff] %v1785
        %1850 = vst [vmem:[%s208 + $0x1b8] sm:$0xff] %v1786
        %1851 = vst [vmem:[%s208 + $0x1c0] sm:$0xff] %v1787
        %1852 = vst [vmem:[%s208 + $0x1c8] sm:$0xff] %v1788
        %1853 = vst [vmem:[%s208 + $0x1d0] sm:$0xff] %v1789
        %1854 = vst [vmem:[%s208 + $0x1d8] sm:$0xff] %v1790
        %1855 = vst [vmem:[%s208 + $0x1e0] sm:$0xff] %v1791
        %1856 = vst [vmem:[%s208 + $0x1e8] sm:$0xff] %v1792
        %1857 = vst [vmem:[%s208 + $0x1f0] sm:$0xff] %v1793
        %1858 = vst [vmem:[%s208 + $0x1f8] sm:$0xff] %v1794
        %s1859 = sand.u32 %s117, 1
        %s1860 = scalar_lea.sflag [#allocation3], %s1859
        %s1861 = sand.u32 %s117, 1
        %s1862 = smul.addr %s1861, 512
        %s1863 = scalar_lea.vmem [#allocation2], %s1862
        // Predicated region
        $region33: #{tpu_custom_call.1} parent=31 // pred_check
          %p1864 = pneg %p127
        $region34: #{tpu_custom_call.1} parent=31 // pred_check_branch
          %1866 = sbr.rel (%p1864) target = $region36
        $region35: #{tpu_custom_call.1} parent=31 // pred_region
          %s1867 = smul.u32 32, %s21
          %s1868 = smul.u32 2, %s22
          %s1870 = ssub.s32 8192, 8192
          %1871 = vsyncadd %s1860, %s1870
          %s1872 = smul.addr %s1867, 2
          %s1873 = sadd.s32 %s1868, %s1872
          %s1874 = smul.addr %s1873, 128
          %s1875 = scalar_lea.hbm %s3, %s1874
          %s1876 = sshll.u32 %s1863, 4
          %s1877 = int_to_ptr.vmem [resolvable:$true] %s1876
          %1882 = dma.vmem_to_hbm [thread:$0]  %s1877, 8192, %s1875, %s1860, 256, 256, 16
        $region36: #{tpu_custom_call.1} parent=31 // pred_fallthru
          _
      $region32: #{tpu_custom_call.1} parent=5 // pred_fallthru
        _
      %p1883 = scmp.le.s32.totalorder 2, %s12
      // Predicated region
      $region37: #{tpu_custom_call.1} parent=5 // pred_check
        %p1884 = pneg %p1883
      $region38: #{tpu_custom_call.1} parent=5 // pred_check_branch
        %1886 = sbr.rel (%p1884) target = $region40
      $region39: #{tpu_custom_call.1} parent=5 // pred_region
        %s1887 = ssub.s32 %s12, 2
        // Predicated region
        $region41: #{tpu_custom_call.1} parent=39 // pred_check
          %p1888 = pneg %p133
        $region42: #{tpu_custom_call.1} parent=39 // pred_check_branch
          %1890 = sbr.rel (%p1888) target = $region44
        $region43: #{tpu_custom_call.1} parent=39 // pred_region
          %s1891 = sand.u32 %s118, 1
          %s1892 = scalar_lea.sflag [#allocation3], %s1891
          %s1893 = sand.u32 %s118, 1
          %s1894 = smul.addr %s1893, 512
          %s1895 = scalar_lea.vmem [#allocation2], %s1894
          %1896 = dma.done %s1892, 8192
        $region44: #{tpu_custom_call.1} parent=39 // pred_fallthru
          _
      $region40: #{tpu_custom_call.1} parent=5 // pred_fallthru
        _
    $region6: #{tpu_custom_call.1} parent=1 // loop_footer
      %s16 = sadd.s32 1, %s12
    $region7: #{tpu_custom_call.1} parent=1 // loop_footer_branch
      %11 = sbr.rel target = $region3
    $region8: #{tpu_custom_call.1} parent=1 // loop_exit
      _
    %1897 = vsyncpa [#allocation3], 1
    %s1898 = scalar_lea.sflag [#allocation3], 1
    %1899 = vsyncpa %s1898, 1

</llo_original>
